<compile_context>
chip_gen: v6e
topology: v6e:2x2x1
jax: 0.10.0
libtpu: 0.0.40
codegen_flags: <defaults>
</compile_context>

<pallas_src>
import numpy as np
import jax
import jax.numpy as jnp
from jax import lax
from jax.experimental import pallas as pl
from jax.experimental.pallas import tpu as pltpu

M_X = 8            # M_x
M_T = 8            # M_t
BATCH = 2

H1, W1 = 2 * M_X, 2 * M_T    # conv1 spatial: 16 x 16
H2, W2 = M_X, M_T            # post-pool spatial: 8 x 8
KHID = 4 * M_T               # hidden width: 32
C1I, C1O = 2, 10             # conv1 in/out channels
C2O = 5                      # conv2 out channels
C3O = 1                      # conv3 out channels
PADV = 2                     # 5x5 "same" -> 2 rows of vertical zero padding


# ----------------------------- Pallas kernel ------------------------------- #

def _net_kernel(x_ref, w1t_ref, r_ref, w3f_ref, b3m_ref,
                m1e_ref, m1o_ref, sec_ref, soc_ref, m2_ref, m3_ref, bias_ref,
                o_ref,
                a_scr, pad1, left1, pad2, left2, pad3, left3):
    B = x_ref.shape[0]
    BH = B * H1
    P1 = H1 + 2 * PADV          # padded rows per batch block for conv1 (20)
    P2 = H2 + 2 * PADV          # padded rows per batch block for conv2/conv3 (12)

    def dot(a, b):
        return jnp.dot(a, b, preferred_element_type=jnp.float32)

    # packed biases: [fc1(32) | conv1 tiled over W2 (80) | conv2 (40) | conv3 (8)]
    o0 = KHID
    o1 = o0 + W2 * C1O
    o2 = o1 + W2 * C2O
    b1 = bias_ref[:, 0:o0]               # (1, 32)
    c1b = bias_ref[:, o0:o1]             # (1, 80)
    c2b = bias_ref[:, o1:o2]             # (1, 40)
    c3b = bias_ref[:, o2:o2 + W2 * C3O]  # (1, 8)

    # ------------------------------ fc1 + relu ------------------------------ #
    h1 = jnp.maximum(dot(x_ref[...], w1t_ref[...]) + b1, 0.0)            # (B, 32)

    # --------- fc3 + relu, NCHW "view" folded into a pre-permuted weight ---- #
    # g repeats each batch's hidden row H1 times; the block-sparse operand
    #   a[r, h*K + k] = g[r, k] * (r % H1 == h)
    # is built in VMEM with an iota mask (no eyetile matmul, no mask constant).
    g = dot(r_ref[...], h1)                                              # (BH, 32)
    row_ids = lax.broadcasted_iota(jnp.int32, (BH, KHID), 0) % H1
    for h in range(H1):
        a_scr[:, h * KHID:(h + 1) * KHID] = jnp.where(row_ids == h, g, 0.0)
    # x1[b*H1+h, w*C1I+ci] = relu(fc3)[b, ci*H1*W1 + h*W1 + w]
    x1 = jnp.maximum(dot(a_scr[...], w3f_ref[...]) + b3m_ref[...], 0.0)  # (BH, 32)

    # ------- conv1 (2->10, 5x5 same) + relu, horizontal 2-pool fused -------- #
    # zero-padded scratch supplies the 5 vertical taps; taps sit side-by-side on
    # lanes and are consumed by ONE banded matmul per pool parity (even/odd cols).
    pad1[...] = jnp.zeros(pad1.shape, pad1.dtype)
    for b in range(B):
        pad1[b * P1 + PADV:b * P1 + PADV + H1, :] = x1[b * H1:(b + 1) * H1, :]
    tw1 = W1 * C1I                                   # 32 lanes per tap
    for kh in range(5):
        for b in range(B):
            left1[b * H1:(b + 1) * H1, kh * tw1:(kh + 1) * tw1] = \
                pad1[b * P1 + kh:b * P1 + kh + H1, :]
    le1 = left1[...]                                                     # (BH, 160)
    pre_e = dot(le1, m1e_ref[...]) + c1b             # conv1 columns 2*w2
    pre_o = dot(le1, m1o_ref[...]) + c1b             # conv1 columns 2*w2+1
    pw = jnp.maximum(jnp.maximum(pre_e, pre_o), 0.0)                     # (BH, 80)

    # ---- vertical half of the 2x2 max-pool (exact 0/1 row-select matmuls) -- #
    ph = jnp.maximum(dot(sec_ref[...], pw), dot(soc_ref[...], pw))       # (B*H2, 80)

    # ------------ conv2 (10->5, 5x5 same) + relu, 5 taps fused -------------- #
    pad2[...] = jnp.zeros(pad2.shape, pad2.dtype)
    for b in range(B):
        pad2[b * P2 + PADV:b * P2 + PADV + H2, :] = ph[b * H2:(b + 1) * H2, :]
    tw2 = W2 * C1O                                   # 80 lanes per tap
    for kh in range(5):
        for b in range(B):
            left2[b * H2:(b + 1) * H2, kh * tw2:(kh + 1) * tw2] = \
                pad2[b * P2 + kh:b * P2 + kh + H2, :]
    c2 = jnp.maximum(dot(left2[...], m2_ref[...]) + c2b, 0.0)            # (B*H2, 40)

    # ------------------- conv3 (5->1, 5x5 same), no relu -------------------- #
    pad3[...] = jnp.zeros(pad3.shape, pad3.dtype)
    for b in range(B):
        pad3[b * P2 + PADV:b * P2 + PADV + H2, :] = c2[b * H2:(b + 1) * H2, :]
    tw3 = W2 * C2O                                   # 40 lanes per tap
    for kh in range(5):
        for b in range(B):
            left3[b * H2:(b + 1) * H2, kh * tw3:(kh + 1) * tw3] = \
                pad3[b * P2 + kh:b * P2 + kh + H2, :]
    c3 = dot(left3[...], m3_ref[...]) + c3b                              # (B*H2, 8)

    # single dense store; the (B, M_x, M_t) reshape happens in the wrapper.
    o_ref[...] = c3


# ------------------------ one-time parameter preparation -------------------- #

def prepare_params(p, batch):
    """Precompute (once, host side) every permuted / banded constant the fused
    kernel needs, so the per-call path is a single pallas_call."""
    q = {k: np.asarray(v, np.float32) for k, v in p.items()}

    # fc1
    w1t = q['fc1_w'].T                                           # (32, 32)
    b1 = q['fc1_b'][None, :]                                     # (1, 32)

    # batch row-repeat matrix: g = R @ h1 repeats each hidden row H1 times
    R = np.repeat(np.eye(batch, dtype=np.float32), H1, axis=0)   # (B*H1, B)

    # fc3 fused with the NCHW view: x1[b*H1+h, w*C1I+ci] = fc3_out[b, ci*H1*W1 + h*W1 + w]
    w3flat = (q['fc3_w'].reshape(C1I, H1, W1, KHID)              # (ci, h, w, k)
                        .transpose(1, 3, 2, 0)                   # (h, k, w, ci)
                        .reshape(H1 * KHID, W1 * C1I))           # (512, 32)
    b3single = (q['fc3_b'].reshape(C1I, H1, W1)
                          .transpose(1, 2, 0)                    # (h, w, ci)
                          .reshape(H1, W1 * C1I))                # (16, 32)
    b3mat = np.tile(b3single, (batch, 1))                        # (B*H1, 32)

    # stacked banded matrix: all 5 vertical taps fused into one matmul.
    #   M[kh*Win*Cin + wi*Cin + ci, j*Cout + co] = w[co, ci, kh, wi - wo + 2]
    # with wo = wo_start + wo_stride*j (zero outside the horizontal band = zero padding).
    def banded_stacked(w, win, wout_count, wo_start, wo_stride):
        cout, cin, KH, KW = w.shape
        M = np.zeros((KH * win * cin, wout_count * cout), np.float32)
        for kh in range(KH):
            for j in range(wout_count):
                wo = wo_start + wo_stride * j
                for kw in range(KW):
                    wi = wo + kw - KW // 2
                    if 0 <= wi < win:
                        M[kh * win * cin + wi * cin:kh * win * cin + (wi + 1) * cin,
                          j * cout:(j + 1) * cout] = w[:, :, kh, kw].T
        return M

    # conv1 split into even / odd output columns (folds the horizontal 2-pool)
    m1e = banded_stacked(q['conv1_w'], W1, W2, 0, 2)             # (160, 80)
    m1o = banded_stacked(q['conv1_w'], W1, W2, 1, 2)             # (160, 80)
    m2 = banded_stacked(q['conv2_w'], W2, W2, 0, 1)              # (400, 40)
    m3 = banded_stacked(q['conv3_w'], W2, W2, 0, 1)              # (200, 8)

    # vertical half of the 2x2 max-pool as exact 0/1 row-select matrices
    seC = np.zeros((batch * H2, batch * H1), np.float32)
    soC = np.zeros_like(seC)
    for b in range(batch):
        for h2 in range(H2):
            seC[b * H2 + h2, b * H1 + 2 * h2] = 1.0
            soC[b * H2 + h2, b * H1 + 2 * h2 + 1] = 1.0

    # all biases packed into a single (1, 160) row: [fc1 | conv1*W2 | conv2*W2 | conv3*W2]
    biases = np.concatenate(
        [b1,
         np.tile(q['conv1_b'], W2)[None, :],
         np.tile(q['conv2_b'], W2)[None, :],
         np.tile(q['conv3_b'], W2)[None, :]], axis=1)            # (1, 160)

    out = dict(w1t=w1t, R=R, w3flat=w3flat, b3mat=b3mat, m1e=m1e, m1o=m1o,
               seC=seC, soC=soC, m2=m2, m3=m3, biases=biases)
    return {k: jnp.asarray(v) for k, v in out.items()}


# ------------------------------- wrapper ----------------------------------- #

_VMEM = pl.BlockSpec(memory_space=pltpu.MemorySpace.VMEM)


@jax.jit
def net_forward(x, prep):
    x = x.astype(jnp.float32)                      # x.float()
    b = x.shape[0]
    assert b * H1 == prep['R'].shape[0], "prepared constants built for another batch"
    P1 = H1 + 2 * PADV
    P2 = H2 + 2 * PADV
    args = (x, prep['w1t'], prep['R'], prep['w3flat'], prep['b3mat'],
            prep['m1e'], prep['m1o'], prep['seC'], prep['soC'],
            prep['m2'], prep['m3'], prep['biases'])
    scratch = [
        pltpu.VMEM((b * H1, H1 * KHID), jnp.float32),     # a_scr  (32, 512)
        pltpu.VMEM((b * P1, W1 * C1I), jnp.float32),      # pad1   (40, 32)
        pltpu.VMEM((b * H1, 5 * W1 * C1I), jnp.float32),  # left1  (32, 160)
        pltpu.VMEM((b * P2, W2 * C1O), jnp.float32),      # pad2   (24, 80)
        pltpu.VMEM((b * H2, 5 * W2 * C1O), jnp.float32),  # left2  (16, 400)
        pltpu.VMEM((b * P2, W2 * C2O), jnp.float32),      # pad3   (24, 40)
        pltpu.VMEM((b * H2, 5 * W2 * C2O), jnp.float32),  # left3  (16, 200)
    ]
    flat = pl.pallas_call(
        _net_kernel,
        out_shape=jax.ShapeDtypeStruct((b * M_X, M_T), jnp.float32),
        in_specs=[_VMEM] * len(args),
        out_specs=_VMEM,
        scratch_shapes=scratch,
    )(*args)
    return flat.reshape(b, M_X, M_T)               # free metadata reshape


# ------------------------ pure-JAX reference (check) ----------------------- #

def torch_net_reference(x, p):
    hp = jax.lax.Precision.HIGHEST
    h = jnp.maximum(jnp.dot(x, p['fc1_w'].T, precision=hp) + p['fc1_b'], 0.0)
    y = jnp.maximum(jnp.dot(h, p['fc3_w'].T, precision=hp) + p['fc3_b'], 0.0)
    z = y.reshape(-1, 2, 2 * M_X, 2 * M_T)

    def conv(v, w, bias):
        o = jax.lax.conv_general_dilated(
            v, w, window_strides=(1, 1), padding=((2, 2), (2, 2)),
            dimension_numbers=('NCHW', 'OIHW', 'NCHW'), precision=hp)
        return o + bias.reshape(1, -1, 1, 1)

    c1 = jnp.maximum(conv(z, p['conv1_w'], p['conv1_b']), 0.0)
    b_, c_, h_, w_ = c1.shape
    pool = c1.reshape(b_, c_, h_ // 2, 2, w_ // 2, 2).max(axis=(3, 5))
    c2 = jnp.maximum(conv(pool, p['conv2_w'], p['conv2_b']), 0.0)
    c3 = conv(c2, p['conv3_w'], p['conv3_b'])
    return c3[:, 0]


# ---------------------------------- main ------------------------------------ #

if __name__ == "__main__":
    key = jax.random.PRNGKey(0)
    ks = jax.random.split(key, 11)
    f_in = 4 * M_T
    f_out = 2 * M_T * M_X * 4
    # deterministic synthetic parameters (torch-native shapes)
    params = {
        'fc1_w':  0.2 * jax.random.normal(ks[0], (f_in, f_in), jnp.float32),
        'fc1_b':  0.1 * jax.random.normal(ks[1], (f_in,), jnp.float32),
        'fc3_w':  0.2 * jax.random.normal(ks[2], (f_out, f_in), jnp.float32),
        'fc3_b':  0.1 * jax.random.normal(ks[3], (f_out,), jnp.float32),
        'conv1_w': 0.2 * jax.random.normal(ks[4], (10, 2, 5, 5), jnp.float32),
        'conv1_b': 0.1 * jax.random.normal(ks[5], (10,), jnp.float32),
        'conv2_w': 0.2 * jax.random.normal(ks[6], (5, 10, 5, 5), jnp.float32),
        'conv2_b': 0.1 * jax.random.normal(ks[7], (5,), jnp.float32),
        'conv3_w': 0.2 * jax.random.normal(ks[8], (1, 5, 5, 5), jnp.float32),
        'conv3_b': 0.1 * jax.random.normal(ks[9], (1,), jnp.float32),
    }
    x = jax.random.normal(ks[10], (BATCH, f_in), jnp.float32)

    prep = prepare_params(params, BATCH)           # one-time, outside the call path

    out = jax.block_until_ready(net_forward(x, prep))
    assert out.shape == (BATCH, M_X, M_T), out.shape

    ref = torch_net_reference(x, params)
    if not np.allclose(np.asarray(out), np.asarray(ref), rtol=1e-2, atol=1e-3):
        err = float(jnp.max(jnp.abs(out - ref)))
        raise AssertionError(f"Pallas output mismatch vs reference, max abs err={err}")

    print("KERNEL_OK")
</pallas_src>

<mosaic_0001>
module attributes {stable_mosaic.version = 11 : i64} {
  func.func @_net_kernel(%arg0: memref<2x32xf32, #tpu.memory_space<vmem>>, %arg1: memref<32x32xf32, #tpu.memory_space<vmem>>, %arg2: memref<32x2xf32, #tpu.memory_space<vmem>>, %arg3: memref<512x32xf32, #tpu.memory_space<vmem>>, %arg4: memref<32x32xf32, #tpu.memory_space<vmem>>, %arg5: memref<160x80xf32, #tpu.memory_space<vmem>>, %arg6: memref<160x80xf32, #tpu.memory_space<vmem>>, %arg7: memref<16x32xf32, #tpu.memory_space<vmem>>, %arg8: memref<16x32xf32, #tpu.memory_space<vmem>>, %arg9: memref<400x40xf32, #tpu.memory_space<vmem>>, %arg10: memref<200x8xf32, #tpu.memory_space<vmem>>, %arg11: memref<1x160xf32, #tpu.memory_space<vmem>>, %arg12: memref<16x8xf32, #tpu.memory_space<vmem>>, %arg13: memref<32x512xf32, #tpu.memory_space<vmem>>, %arg14: memref<40x32xf32, #tpu.memory_space<vmem>>, %arg15: memref<32x160xf32, #tpu.memory_space<vmem>>, %arg16: memref<24x80xf32, #tpu.memory_space<vmem>>, %arg17: memref<16x400xf32, #tpu.memory_space<vmem>>, %arg18: memref<24x40xf32, #tpu.memory_space<vmem>>, %arg19: memref<16x200xf32, #tpu.memory_space<vmem>>) attributes {dimension_semantics = [], scalar_prefetch = 0 : i64, scratch_operands = 7 : i64, tpu.core_type = #tpu.core_type<tc>} {
    %c0 = arith.constant 0 : index
    %c0_0 = arith.constant 0 : index
    %0 = vector.load %arg11[%c0, %c0_0] : memref<1x160xf32, #tpu.memory_space<vmem>>, vector<1x32xf32>
    %c0_1 = arith.constant 0 : index
    %c32 = arith.constant 32 : index
    %1 = vector.load %arg11[%c0_1, %c32] : memref<1x160xf32, #tpu.memory_space<vmem>>, vector<1x80xf32>
    %c0_2 = arith.constant 0 : index
    %c112 = arith.constant 112 : index
    %2 = vector.load %arg11[%c0_2, %c112] : memref<1x160xf32, #tpu.memory_space<vmem>>, vector<1x40xf32>
    %c0_3 = arith.constant 0 : index
    %c152 = arith.constant 152 : index
    %3 = vector.load %arg11[%c0_3, %c152] : memref<1x160xf32, #tpu.memory_space<vmem>>, vector<1x8xf32>
    %c0_4 = arith.constant 0 : index
    %c0_5 = arith.constant 0 : index
    %4 = vector.load %arg0[%c0_4, %c0_5] : memref<2x32xf32, #tpu.memory_space<vmem>>, vector<2x32xf32>
    %c0_6 = arith.constant 0 : index
    %c0_7 = arith.constant 0 : index
    %5 = vector.load %arg1[%c0_6, %c0_7] : memref<32x32xf32, #tpu.memory_space<vmem>>, vector<32x32xf32>
    %cst = arith.constant dense<0.000000e+00> : vector<2x32xf32>
    %6 = tpu.matmul %4, %5, %cst {dimension_numbers = #tpu.dot_dimension_numbers<[1], [0], [0], [1], [0, 0, 1, 1], [], []>} : vector<2x32xf32>, vector<32x32xf32>, vector<2x32xf32> -> vector<2x32xf32>
    %7 = vector.broadcast %0 : vector<1x32xf32> to vector<2x32xf32>
    %8 = arith.addf %6, %7 : vector<2x32xf32>
    %cst_8 = arith.constant 0.000000e+00 : f32
    %9 = vector.broadcast %cst_8 : f32 to vector<2x32xf32>
    %10 = arith.maximumf %8, %9 : vector<2x32xf32>
    %c0_9 = arith.constant 0 : index
    %c0_10 = arith.constant 0 : index
    %11 = vector.load %arg2[%c0_9, %c0_10] : memref<32x2xf32, #tpu.memory_space<vmem>>, vector<32x2xf32>
    %cst_11 = arith.constant dense<0.000000e+00> : vector<32x32xf32>
    %12 = tpu.matmul %11, %10, %cst_11 {dimension_numbers = #tpu.dot_dimension_numbers<[1], [0], [0], [1], [0, 0, 1, 1], [], []>} : vector<32x2xf32>, vector<2x32xf32>, vector<32x32xf32> -> vector<32x32xf32>
    %13 = tpu.iota {dimensions = array<i32: 0>} : vector<32x32xi32>
    %c16_i32 = arith.constant 16 : i32
    %c0_i32 = arith.constant 0 : i32
    %14 = arith.cmpi eq, %c16_i32, %c0_i32 : i32
    %c1_i32 = arith.constant 1 : i32
    %15 = arith.select %14, %c1_i32, %c16_i32 : i32
    %16 = vector.broadcast %15 : i32 to vector<32x32xi32>
    %17 = arith.remsi %13, %16 : vector<32x32xi32>
    %c0_i32_12 = arith.constant 0 : i32
    %18 = vector.broadcast %c0_i32_12 : i32 to vector<32x32xi32>
    %19 = arith.cmpi ne, %17, %18 : vector<32x32xi32>
    %c0_i32_13 = arith.constant 0 : i32
    %20 = vector.broadcast %c0_i32_13 : i32 to vector<32x32xi32>
    %21 = arith.cmpi slt, %17, %20 : vector<32x32xi32>
    %c0_i32_14 = arith.constant 0 : i32
    %22 = arith.cmpi slt, %15, %c0_i32_14 : i32
    %23 = vector.broadcast %22 : i1 to vector<32x32xi1>
    %24 = vector.broadcast %23 : vector<32x32xi1> to vector<32x32xi1>
    %25 = arith.xori %21, %24 : vector<32x32xi1>
    %26 = arith.andi %25, %19 : vector<32x32xi1>
    %27 = vector.broadcast %15 : i32 to vector<32x32xi32>
    %28 = arith.addi %17, %27 : vector<32x32xi32>
    %29 = arith.select %26, %28, %17 : vector<32x32xi1>, vector<32x32xi32>
    %c0_i32_15 = arith.constant 0 : i32
    %30 = vector.broadcast %c0_i32_15 : i32 to vector<32x32xi32>
    %31 = arith.cmpi eq, %29, %30 : vector<32x32xi32>
    %cst_16 = arith.constant 0.000000e+00 : f32
    %32 = vector.broadcast %cst_16 : f32 to vector<32x32xf32>
    %33 = arith.select %31, %12, %32 : vector<32x32xi1>, vector<32x32xf32>
    %c0_17 = arith.constant 0 : index
    %c0_18 = arith.constant 0 : index
    %34 = vector.load %arg13[%c0_17, %c0_18] : memref<32x512xf32, #tpu.memory_space<vmem>>, vector<32x32xf32>
    tpu.vector_store %arg13[%c0_17, %c0_18], %33 {strides = array<i32>} : memref<32x512xf32, #tpu.memory_space<vmem>>, vector<32x32xf32>,
    %c1_i32_19 = arith.constant 1 : i32
    %35 = vector.broadcast %c1_i32_19 : i32 to vector<32x32xi32>
    %36 = arith.cmpi eq, %29, %35 : vector<32x32xi32>
    %cst_20 = arith.constant 0.000000e+00 : f32
    %37 = vector.broadcast %cst_20 : f32 to vector<32x32xf32>
    %38 = arith.select %36, %12, %37 : vector<32x32xi1>, vector<32x32xf32>
    %c0_21 = arith.constant 0 : index
    %c32_22 = arith.constant 32 : index
    %39 = vector.load %arg13[%c0_21, %c32_22] : memref<32x512xf32, #tpu.memory_space<vmem>>, vector<32x32xf32>
    tpu.vector_store %arg13[%c0_21, %c32_22], %38 {strides = array<i32>} : memref<32x512xf32, #tpu.memory_space<vmem>>, vector<32x32xf32>,
    %c2_i32 = arith.constant 2 : i32
    %40 = vector.broadcast %c2_i32 : i32 to vector<32x32xi32>
    %41 = arith.cmpi eq, %29, %40 : vector<32x32xi32>
    %cst_23 = arith.constant 0.000000e+00 : f32
    %42 = vector.broadcast %cst_23 : f32 to vector<32x32xf32>
    %43 = arith.select %41, %12, %42 : vector<32x32xi1>, vector<32x32xf32>
    %c0_24 = arith.constant 0 : index
    %c64 = arith.constant 64 : index
    %44 = vector.load %arg13[%c0_24, %c64] : memref<32x512xf32, #tpu.memory_space<vmem>>, vector<32x32xf32>
    tpu.vector_store %arg13[%c0_24, %c64], %43 {strides = array<i32>} : memref<32x512xf32, #tpu.memory_space<vmem>>, vector<32x32xf32>,
    %c3_i32 = arith.constant 3 : i32
    %45 = vector.broadcast %c3_i32 : i32 to vector<32x32xi32>
    %46 = arith.cmpi eq, %29, %45 : vector<32x32xi32>
    %cst_25 = arith.constant 0.000000e+00 : f32
    %47 = vector.broadcast %cst_25 : f32 to vector<32x32xf32>
    %48 = arith.select %46, %12, %47 : vector<32x32xi1>, vector<32x32xf32>
    %c0_26 = arith.constant 0 : index
    %c96 = arith.constant 96 : index
    %49 = vector.load %arg13[%c0_26, %c96] : memref<32x512xf32, #tpu.memory_space<vmem>>, vector<32x32xf32>
    tpu.vector_store %arg13[%c0_26, %c96], %48 {strides = array<i32>} : memref<32x512xf32, #tpu.memory_space<vmem>>, vector<32x32xf32>,
    %c4_i32 = arith.constant 4 : i32
    %50 = vector.broadcast %c4_i32 : i32 to vector<32x32xi32>
    %51 = arith.cmpi eq, %29, %50 : vector<32x32xi32>
    %cst_27 = arith.constant 0.000000e+00 : f32
    %52 = vector.broadcast %cst_27 : f32 to vector<32x32xf32>
    %53 = arith.select %51, %12, %52 : vector<32x32xi1>, vector<32x32xf32>
    %c0_28 = arith.constant 0 : index
    %c128 = arith.constant 128 : index
    %54 = vector.load %arg13[%c0_28, %c128] : memref<32x512xf32, #tpu.memory_space<vmem>>, vector<32x32xf32>
    tpu.vector_store %arg13[%c0_28, %c128], %53 {strides = array<i32>} : memref<32x512xf32, #tpu.memory_space<vmem>>, vector<32x32xf32>,
    %c5_i32 = arith.constant 5 : i32
    %55 = vector.broadcast %c5_i32 : i32 to vector<32x32xi32>
    %56 = arith.cmpi eq, %29, %55 : vector<32x32xi32>
    %cst_29 = arith.constant 0.000000e+00 : f32
    %57 = vector.broadcast %cst_29 : f32 to vector<32x32xf32>
    %58 = arith.select %56, %12, %57 : vector<32x32xi1>, vector<32x32xf32>
    %c0_30 = arith.constant 0 : index
    %c160 = arith.constant 160 : index
    %59 = vector.load %arg13[%c0_30, %c160] : memref<32x512xf32, #tpu.memory_space<vmem>>, vector<32x32xf32>
    tpu.vector_store %arg13[%c0_30, %c160], %58 {strides = array<i32>} : memref<32x512xf32, #tpu.memory_space<vmem>>, vector<32x32xf32>,
    %c6_i32 = arith.constant 6 : i32
    %60 = vector.broadcast %c6_i32 : i32 to vector<32x32xi32>
    %61 = arith.cmpi eq, %29, %60 : vector<32x32xi32>
    %cst_31 = arith.constant 0.000000e+00 : f32
    %62 = vector.broadcast %cst_31 : f32 to vector<32x32xf32>
    %63 = arith.select %61, %12, %62 : vector<32x32xi1>, vector<32x32xf32>
    %c0_32 = arith.constant 0 : index
    %c192 = arith.constant 192 : index
    %64 = vector.load %arg13[%c0_32, %c192] : memref<32x512xf32, #tpu.memory_space<vmem>>, vector<32x32xf32>
    tpu.vector_store %arg13[%c0_32, %c192], %63 {strides = array<i32>} : memref<32x512xf32, #tpu.memory_space<vmem>>, vector<32x32xf32>,
    %c7_i32 = arith.constant 7 : i32
    %65 = vector.broadcast %c7_i32 : i32 to vector<32x32xi32>
    %66 = arith.cmpi eq, %29, %65 : vector<32x32xi32>
    %cst_33 = arith.constant 0.000000e+00 : f32
    %67 = vector.broadcast %cst_33 : f32 to vector<32x32xf32>
    %68 = arith.select %66, %12, %67 : vector<32x32xi1>, vector<32x32xf32>
    %c0_34 = arith.constant 0 : index
    %c224 = arith.constant 224 : index
    %69 = vector.load %arg13[%c0_34, %c224] : memref<32x512xf32, #tpu.memory_space<vmem>>, vector<32x32xf32>
    tpu.vector_store %arg13[%c0_34, %c224], %68 {strides = array<i32>} : memref<32x512xf32, #tpu.memory_space<vmem>>, vector<32x32xf32>,
    %c8_i32 = arith.constant 8 : i32
    %70 = vector.broadcast %c8_i32 : i32 to vector<32x32xi32>
    %71 = arith.cmpi eq, %29, %70 : vector<32x32xi32>
    %cst_35 = arith.constant 0.000000e+00 : f32
    %72 = vector.broadcast %cst_35 : f32 to vector<32x32xf32>
    %73 = arith.select %71, %12, %72 : vector<32x32xi1>, vector<32x32xf32>
    %c0_36 = arith.constant 0 : index
    %c256 = arith.constant 256 : index
    %74 = vector.load %arg13[%c0_36, %c256] : memref<32x512xf32, #tpu.memory_space<vmem>>, vector<32x32xf32>
    tpu.vector_store %arg13[%c0_36, %c256], %73 {strides = array<i32>} : memref<32x512xf32, #tpu.memory_space<vmem>>, vector<32x32xf32>,
    %c9_i32 = arith.constant 9 : i32
    %75 = vector.broadcast %c9_i32 : i32 to vector<32x32xi32>
    %76 = arith.cmpi eq, %29, %75 : vector<32x32xi32>
    %cst_37 = arith.constant 0.000000e+00 : f32
    %77 = vector.broadcast %cst_37 : f32 to vector<32x32xf32>
    %78 = arith.select %76, %12, %77 : vector<32x32xi1>, vector<32x32xf32>
    %c0_38 = arith.constant 0 : index
    %c288 = arith.constant 288 : index
    %79 = vector.load %arg13[%c0_38, %c288] : memref<32x512xf32, #tpu.memory_space<vmem>>, vector<32x32xf32>
    tpu.vector_store %arg13[%c0_38, %c288], %78 {strides = array<i32>} : memref<32x512xf32, #tpu.memory_space<vmem>>, vector<32x32xf32>,
    %c10_i32 = arith.constant 10 : i32
    %80 = vector.broadcast %c10_i32 : i32 to vector<32x32xi32>
    %81 = arith.cmpi eq, %29, %80 : vector<32x32xi32>
    %cst_39 = arith.constant 0.000000e+00 : f32
    %82 = vector.broadcast %cst_39 : f32 to vector<32x32xf32>
    %83 = arith.select %81, %12, %82 : vector<32x32xi1>, vector<32x32xf32>
    %c0_40 = arith.constant 0 : index
    %c320 = arith.constant 320 : index
    %84 = vector.load %arg13[%c0_40, %c320] : memref<32x512xf32, #tpu.memory_space<vmem>>, vector<32x32xf32>
    tpu.vector_store %arg13[%c0_40, %c320], %83 {strides = array<i32>} : memref<32x512xf32, #tpu.memory_space<vmem>>, vector<32x32xf32>,
    %c11_i32 = arith.constant 11 : i32
    %85 = vector.broadcast %c11_i32 : i32 to vector<32x32xi32>
    %86 = arith.cmpi eq, %29, %85 : vector<32x32xi32>
    %cst_41 = arith.constant 0.000000e+00 : f32
    %87 = vector.broadcast %cst_41 : f32 to vector<32x32xf32>
    %88 = arith.select %86, %12, %87 : vector<32x32xi1>, vector<32x32xf32>
    %c0_42 = arith.constant 0 : index
    %c352 = arith.constant 352 : index
    %89 = vector.load %arg13[%c0_42, %c352] : memref<32x512xf32, #tpu.memory_space<vmem>>, vector<32x32xf32>
    tpu.vector_store %arg13[%c0_42, %c352], %88 {strides = array<i32>} : memref<32x512xf32, #tpu.memory_space<vmem>>, vector<32x32xf32>,
    %c12_i32 = arith.constant 12 : i32
    %90 = vector.broadcast %c12_i32 : i32 to vector<32x32xi32>
    %91 = arith.cmpi eq, %29, %90 : vector<32x32xi32>
    %cst_43 = arith.constant 0.000000e+00 : f32
    %92 = vector.broadcast %cst_43 : f32 to vector<32x32xf32>
    %93 = arith.select %91, %12, %92 : vector<32x32xi1>, vector<32x32xf32>
    %c0_44 = arith.constant 0 : index
    %c384 = arith.constant 384 : index
    %94 = vector.load %arg13[%c0_44, %c384] : memref<32x512xf32, #tpu.memory_space<vmem>>, vector<32x32xf32>
    tpu.vector_store %arg13[%c0_44, %c384], %93 {strides = array<i32>} : memref<32x512xf32, #tpu.memory_space<vmem>>, vector<32x32xf32>,
    %c13_i32 = arith.constant 13 : i32
    %95 = vector.broadcast %c13_i32 : i32 to vector<32x32xi32>
    %96 = arith.cmpi eq, %29, %95 : vector<32x32xi32>
    %cst_45 = arith.constant 0.000000e+00 : f32
    %97 = vector.broadcast %cst_45 : f32 to vector<32x32xf32>
    %98 = arith.select %96, %12, %97 : vector<32x32xi1>, vector<32x32xf32>
    %c0_46 = arith.constant 0 : index
    %c416 = arith.constant 416 : index
    %99 = vector.load %arg13[%c0_46, %c416] : memref<32x512xf32, #tpu.memory_space<vmem>>, vector<32x32xf32>
    tpu.vector_store %arg13[%c0_46, %c416], %98 {strides = array<i32>} : memref<32x512xf32, #tpu.memory_space<vmem>>, vector<32x32xf32>,
    %c14_i32 = arith.constant 14 : i32
    %100 = vector.broadcast %c14_i32 : i32 to vector<32x32xi32>
    %101 = arith.cmpi eq, %29, %100 : vector<32x32xi32>
    %cst_47 = arith.constant 0.000000e+00 : f32
    %102 = vector.broadcast %cst_47 : f32 to vector<32x32xf32>
    %103 = arith.select %101, %12, %102 : vector<32x32xi1>, vector<32x32xf32>
    %c0_48 = arith.constant 0 : index
    %c448 = arith.constant 448 : index
    %104 = vector.load %arg13[%c0_48, %c448] : memref<32x512xf32, #tpu.memory_space<vmem>>, vector<32x32xf32>
    tpu.vector_store %arg13[%c0_48, %c448], %103 {strides = array<i32>} : memref<32x512xf32, #tpu.memory_space<vmem>>, vector<32x32xf32>,
    %c15_i32 = arith.constant 15 : i32
    %105 = vector.broadcast %c15_i32 : i32 to vector<32x32xi32>
    %106 = arith.cmpi eq, %29, %105 : vector<32x32xi32>
    %cst_49 = arith.constant 0.000000e+00 : f32
    %107 = vector.broadcast %cst_49 : f32 to vector<32x32xf32>
    %108 = arith.select %106, %12, %107 : vector<32x32xi1>, vector<32x32xf32>
    %c0_50 = arith.constant 0 : index
    %c480 = arith.constant 480 : index
    %109 = vector.load %arg13[%c0_50, %c480] : memref<32x512xf32, #tpu.memory_space<vmem>>, vector<32x32xf32>
    tpu.vector_store %arg13[%c0_50, %c480], %108 {strides = array<i32>} : memref<32x512xf32, #tpu.memory_space<vmem>>, vector<32x32xf32>,
    %c0_51 = arith.constant 0 : index
    %c0_52 = arith.constant 0 : index
    %110 = vector.load %arg13[%c0_51, %c0_52] : memref<32x512xf32, #tpu.memory_space<vmem>>, vector<32x512xf32>
    %c0_53 = arith.constant 0 : index
    %c0_54 = arith.constant 0 : index
    %111 = vector.load %arg3[%c0_53, %c0_54] : memref<512x32xf32, #tpu.memory_space<vmem>>, vector<512x32xf32>
    %cst_55 = arith.constant dense<0.000000e+00> : vector<32x32xf32>
    %112 = tpu.matmul %110, %111, %cst_55 {dimension_numbers = #tpu.dot_dimension_numbers<[1], [0], [0], [1], [0, 0, 1, 1], [], []>} : vector<32x512xf32>, vector<512x32xf32>, vector<32x32xf32> -> vector<32x32xf32>
    %c0_56 = arith.constant 0 : index
    %c0_57 = arith.constant 0 : index
    %113 = vector.load %arg4[%c0_56, %c0_57] : memref<32x32xf32, #tpu.memory_space<vmem>>, vector<32x32xf32>
    %114 = arith.addf %112, %113 : vector<32x32xf32>
    %cst_58 = arith.constant 0.000000e+00 : f32
    %115 = vector.broadcast %cst_58 : f32 to vector<32x32xf32>
    %116 = arith.maximumf %114, %115 : vector<32x32xf32>
    %cst_59 = arith.constant 0.000000e+00 : f32
    %117 = vector.broadcast %cst_59 : f32 to vector<40x32xf32>
    %c0_60 = arith.constant 0 : index
    %c0_61 = arith.constant 0 : index
    %118 = vector.load %arg14[%c0_60, %c0_61] : memref<40x32xf32, #tpu.memory_space<vmem>>, vector<40x32xf32>
    tpu.vector_store %arg14[%c0_60, %c0_61], %117 {strides = array<i32>} : memref<40x32xf32, #tpu.memory_space<vmem>>, vector<40x32xf32>,
    %119 = vector.extract_strided_slice %116 {offsets = [0, 0], sizes = [16, 32], strides = [1, 1]} : vector<32x32xf32> to vector<16x32xf32>
    %c2 = arith.constant 2 : index
    %c0_62 = arith.constant 0 : index
    %120 = vector.load %arg14[%c2, %c0_62] : memref<40x32xf32, #tpu.memory_space<vmem>>, vector<16x32xf32>
    tpu.vector_store %arg14[%c2, %c0_62], %119 {strides = array<i32>} : memref<40x32xf32, #tpu.memory_space<vmem>>, vector<16x32xf32>,
    %121 = vector.extract_strided_slice %116 {offsets = [16, 0], sizes = [16, 32], strides = [1, 1]} : vector<32x32xf32> to vector<16x32xf32>
    %c22 = arith.constant 22 : index
    %c0_63 = arith.constant 0 : index
    %122 = vector.load %arg14[%c22, %c0_63] : memref<40x32xf32, #tpu.memory_space<vmem>>, vector<16x32xf32>
    tpu.vector_store %arg14[%c22, %c0_63], %121 {strides = array<i32>} : memref<40x32xf32, #tpu.memory_space<vmem>>, vector<16x32xf32>,
    %c0_64 = arith.constant 0 : index
    %c0_65 = arith.constant 0 : index
    %123 = vector.load %arg14[%c0_64, %c0_65] : memref<40x32xf32, #tpu.memory_space<vmem>>, vector<16x32xf32>
    %c0_66 = arith.constant 0 : index
    %c0_67 = arith.constant 0 : index
    %124 = vector.load %arg15[%c0_66, %c0_67] : memref<32x160xf32, #tpu.memory_space<vmem>>, vector<16x32xf32>
    tpu.vector_store %arg15[%c0_66, %c0_67], %123 {strides = array<i32>} : memref<32x160xf32, #tpu.memory_space<vmem>>, vector<16x32xf32>,
    %c20 = arith.constant 20 : index
    %c0_68 = arith.constant 0 : index
    %125 = vector.load %arg14[%c20, %c0_68] : memref<40x32xf32, #tpu.memory_space<vmem>>, vector<16x32xf32>
    %c16 = arith.constant 16 : index
    %c0_69 = arith.constant 0 : index
    %126 = vector.load %arg15[%c16, %c0_69] : memref<32x160xf32, #tpu.memory_space<vmem>>, vector<16x32xf32>
    tpu.vector_store %arg15[%c16, %c0_69], %125 {strides = array<i32>} : memref<32x160xf32, #tpu.memory_space<vmem>>, vector<16x32xf32>,
    %c1 = arith.constant 1 : index
    %c0_70 = arith.constant 0 : index
    %127 = vector.load %arg14[%c1, %c0_70] : memref<40x32xf32, #tpu.memory_space<vmem>>, vector<16x32xf32>
    %c0_71 = arith.constant 0 : index
    %c32_72 = arith.constant 32 : index
    %128 = vector.load %arg15[%c0_71, %c32_72] : memref<32x160xf32, #tpu.memory_space<vmem>>, vector<16x32xf32>
    tpu.vector_store %arg15[%c0_71, %c32_72], %127 {strides = array<i32>} : memref<32x160xf32, #tpu.memory_space<vmem>>, vector<16x32xf32>,
    %c21 = arith.constant 21 : index
    %c0_73 = arith.constant 0 : index
    %129 = vector.load %arg14[%c21, %c0_73] : memref<40x32xf32, #tpu.memory_space<vmem>>, vector<16x32xf32>
    %c16_74 = arith.constant 16 : index
    %c32_75 = arith.constant 32 : index
    %130 = vector.load %arg15[%c16_74, %c32_75] : memref<32x160xf32, #tpu.memory_space<vmem>>, vector<16x32xf32>
    tpu.vector_store %arg15[%c16_74, %c32_75], %129 {strides = array<i32>} : memref<32x160xf32, #tpu.memory_space<vmem>>, vector<16x32xf32>,
    %c2_76 = arith.constant 2 : index
    %c0_77 = arith.constant 0 : index
    %131 = vector.load %arg14[%c2_76, %c0_77] : memref<40x32xf32, #tpu.memory_space<vmem>>, vector<16x32xf32>
    %c0_78 = arith.constant 0 : index
    %c64_79 = arith.constant 64 : index
    %132 = vector.load %arg15[%c0_78, %c64_79] : memref<32x160xf32, #tpu.memory_space<vmem>>, vector<16x32xf32>
    tpu.vector_store %arg15[%c0_78, %c64_79], %131 {strides = array<i32>} : memref<32x160xf32, #tpu.memory_space<vmem>>, vector<16x32xf32>,
    %c22_80 = arith.constant 22 : index
    %c0_81 = arith.constant 0 : index
    %133 = vector.load %arg14[%c22_80, %c0_81] : memref<40x32xf32, #tpu.memory_space<vmem>>, vector<16x32xf32>
    %c16_82 = arith.constant 16 : index
    %c64_83 = arith.constant 64 : index
    %134 = vector.load %arg15[%c16_82, %c64_83] : memref<32x160xf32, #tpu.memory_space<vmem>>, vector<16x32xf32>
    tpu.vector_store %arg15[%c16_82, %c64_83], %133 {strides = array<i32>} : memref<32x160xf32, #tpu.memory_space<vmem>>, vector<16x32xf32>,
    %c3 = arith.constant 3 : index
    %c0_84 = arith.constant 0 : index
    %135 = vector.load %arg14[%c3, %c0_84] : memref<40x32xf32, #tpu.memory_space<vmem>>, vector<16x32xf32>
    %c0_85 = arith.constant 0 : index
    %c96_86 = arith.constant 96 : index
    %136 = vector.load %arg15[%c0_85, %c96_86] : memref<32x160xf32, #tpu.memory_space<vmem>>, vector<16x32xf32>
    tpu.vector_store %arg15[%c0_85, %c96_86], %135 {strides = array<i32>} : memref<32x160xf32, #tpu.memory_space<vmem>>, vector<16x32xf32>,
    %c23 = arith.constant 23 : index
    %c0_87 = arith.constant 0 : index
    %137 = vector.load %arg14[%c23, %c0_87] : memref<40x32xf32, #tpu.memory_space<vmem>>, vector<16x32xf32>
    %c16_88 = arith.constant 16 : index
    %c96_89 = arith.constant 96 : index
    %138 = vector.load %arg15[%c16_88, %c96_89] : memref<32x160xf32, #tpu.memory_space<vmem>>, vector<16x32xf32>
    tpu.vector_store %arg15[%c16_88, %c96_89], %137 {strides = array<i32>} : memref<32x160xf32, #tpu.memory_space<vmem>>, vector<16x32xf32>,
    %c4 = arith.constant 4 : index
    %c0_90 = arith.constant 0 : index
    %139 = vector.load %arg14[%c4, %c0_90] : memref<40x32xf32, #tpu.memory_space<vmem>>, vector<16x32xf32>
    %c0_91 = arith.constant 0 : index
    %c128_92 = arith.constant 128 : index
    %140 = vector.load %arg15[%c0_91, %c128_92] : memref<32x160xf32, #tpu.memory_space<vmem>>, vector<16x32xf32>
    tpu.vector_store %arg15[%c0_91, %c128_92], %139 {strides = array<i32>} : memref<32x160xf32, #tpu.memory_space<vmem>>, vector<16x32xf32>,
    %c24 = arith.constant 24 : index
    %c0_93 = arith.constant 0 : index
    %141 = vector.load %arg14[%c24, %c0_93] : memref<40x32xf32, #tpu.memory_space<vmem>>, vector<16x32xf32>
    %c16_94 = arith.constant 16 : index
    %c128_95 = arith.constant 128 : index
    %142 = vector.load %arg15[%c16_94, %c128_95] : memref<32x160xf32, #tpu.memory_space<vmem>>, vector<16x32xf32>
    tpu.vector_store %arg15[%c16_94, %c128_95], %141 {strides = array<i32>} : memref<32x160xf32, #tpu.memory_space<vmem>>, vector<16x32xf32>,
    %c0_96 = arith.constant 0 : index
    %c0_97 = arith.constant 0 : index
    %143 = vector.load %arg15[%c0_96, %c0_97] : memref<32x160xf32, #tpu.memory_space<vmem>>, vector<32x160xf32>
    %c0_98 = arith.constant 0 : index
    %c0_99 = arith.constant 0 : index
    %144 = vector.load %arg5[%c0_98, %c0_99] : memref<160x80xf32, #tpu.memory_space<vmem>>, vector<160x80xf32>
    %cst_100 = arith.constant dense<0.000000e+00> : vector<32x80xf32>
    %145 = tpu.matmul %143, %144, %cst_100 {dimension_numbers = #tpu.dot_dimension_numbers<[1], [0], [0], [1], [0, 0, 1, 1], [], []>} : vector<32x160xf32>, vector<160x80xf32>, vector<32x80xf32> -> vector<32x80xf32>
    %146 = vector.broadcast %1 : vector<1x80xf32> to vector<32x80xf32>
    %147 = arith.addf %145, %146 : vector<32x80xf32>
    %c0_101 = arith.constant 0 : index
    %c0_102 = arith.constant 0 : index
    %148 = vector.load %arg6[%c0_101, %c0_102] : memref<160x80xf32, #tpu.memory_space<vmem>>, vector<160x80xf32>
    %cst_103 = arith.constant dense<0.000000e+00> : vector<32x80xf32>
    %149 = tpu.matmul %143, %148, %cst_103 {dimension_numbers = #tpu.dot_dimension_numbers<[1], [0], [0], [1], [0, 0, 1, 1], [], []>} : vector<32x160xf32>, vector<160x80xf32>, vector<32x80xf32> -> vector<32x80xf32>
    %150 = vector.broadcast %1 : vector<1x80xf32> to vector<32x80xf32>
    %151 = arith.addf %149, %150 : vector<32x80xf32>
    %152 = arith.maximumf %147, %151 : vector<32x80xf32>
    %cst_104 = arith.constant 0.000000e+00 : f32
    %153 = vector.broadcast %cst_104 : f32 to vector<32x80xf32>
    %154 = arith.maximumf %152, %153 : vector<32x80xf32>
    %c0_105 = arith.constant 0 : index
    %c0_106 = arith.constant 0 : index
    %155 = vector.load %arg7[%c0_105, %c0_106] : memref<16x32xf32, #tpu.memory_space<vmem>>, vector<16x32xf32>
    %cst_107 = arith.constant dense<0.000000e+00> : vector<16x80xf32>
    %156 = tpu.matmul %155, %154, %cst_107 {dimension_numbers = #tpu.dot_dimension_numbers<[1], [0], [0], [1], [0, 0, 1, 1], [], []>} : vector<16x32xf32>, vector<32x80xf32>, vector<16x80xf32> -> vector<16x80xf32>
    %c0_108 = arith.constant 0 : index
    %c0_109 = arith.constant 0 : index
    %157 = vector.load %arg8[%c0_108, %c0_109] : memref<16x32xf32, #tpu.memory_space<vmem>>, vector<16x32xf32>
    %cst_110 = arith.constant dense<0.000000e+00> : vector<16x80xf32>
    %158 = tpu.matmul %157, %154, %cst_110 {dimension_numbers = #tpu.dot_dimension_numbers<[1], [0], [0], [1], [0, 0, 1, 1], [], []>} : vector<16x32xf32>, vector<32x80xf32>, vector<16x80xf32> -> vector<16x80xf32>
    %159 = arith.maximumf %156, %158 : vector<16x80xf32>
    %cst_111 = arith.constant 0.000000e+00 : f32
    %160 = vector.broadcast %cst_111 : f32 to vector<24x80xf32>
    %c0_112 = arith.constant 0 : index
    %c0_113 = arith.constant 0 : index
    %161 = vector.load %arg16[%c0_112, %c0_113] : memref<24x80xf32, #tpu.memory_space<vmem>>, vector<24x80xf32>
    tpu.vector_store %arg16[%c0_112, %c0_113], %160 {strides = array<i32>} : memref<24x80xf32, #tpu.memory_space<vmem>>, vector<24x80xf32>,
    %162 = vector.extract_strided_slice %159 {offsets = [0, 0], sizes = [8, 80], strides = [1, 1]} : vector<16x80xf32> to vector<8x80xf32>
    %c2_114 = arith.constant 2 : index
    %c0_115 = arith.constant 0 : index
    %163 = vector.load %arg16[%c2_114, %c0_115] : memref<24x80xf32, #tpu.memory_space<vmem>>, vector<8x80xf32>
    tpu.vector_store %arg16[%c2_114, %c0_115], %162 {strides = array<i32>} : memref<24x80xf32, #tpu.memory_space<vmem>>, vector<8x80xf32>,
    %164 = vector.extract_strided_slice %159 {offsets = [8, 0], sizes = [8, 80], strides = [1, 1]} : vector<16x80xf32> to vector<8x80xf32>
    %c14 = arith.constant 14 : index
    %c0_116 = arith.constant 0 : index
    %165 = vector.load %arg16[%c14, %c0_116] : memref<24x80xf32, #tpu.memory_space<vmem>>, vector<8x80xf32>
    tpu.vector_store %arg16[%c14, %c0_116], %164 {strides = array<i32>} : memref<24x80xf32, #tpu.memory_space<vmem>>, vector<8x80xf32>,
    %c0_117 = arith.constant 0 : index
    %c0_118 = arith.constant 0 : index
    %166 = vector.load %arg16[%c0_117, %c0_118] : memref<24x80xf32, #tpu.memory_space<vmem>>, vector<8x80xf32>
    %c0_119 = arith.constant 0 : index
    %c0_120 = arith.constant 0 : index
    %167 = vector.load %arg17[%c0_119, %c0_120] : memref<16x400xf32, #tpu.memory_space<vmem>>, vector<8x80xf32>
    tpu.vector_store %arg17[%c0_119, %c0_120], %166 {strides = array<i32>} : memref<16x400xf32, #tpu.memory_space<vmem>>, vector<8x80xf32>,
    %c12 = arith.constant 12 : index
    %c0_121 = arith.constant 0 : index
    %168 = vector.load %arg16[%c12, %c0_121] : memref<24x80xf32, #tpu.memory_space<vmem>>, vector<8x80xf32>
    %c8 = arith.constant 8 : index
    %c0_122 = arith.constant 0 : index
    %169 = vector.load %arg17[%c8, %c0_122] : memref<16x400xf32, #tpu.memory_space<vmem>>, vector<8x80xf32>
    tpu.vector_store %arg17[%c8, %c0_122], %168 {strides = array<i32>} : memref<16x400xf32, #tpu.memory_space<vmem>>, vector<8x80xf32>,
    %c1_123 = arith.constant 1 : index
    %c0_124 = arith.constant 0 : index
    %170 = vector.load %arg16[%c1_123, %c0_124] : memref<24x80xf32, #tpu.memory_space<vmem>>, vector<8x80xf32>
    %c0_125 = arith.constant 0 : index
    %c80 = arith.constant 80 : index
    %171 = vector.load %arg17[%c0_125, %c80] : memref<16x400xf32, #tpu.memory_space<vmem>>, vector<8x80xf32>
    tpu.vector_store %arg17[%c0_125, %c80], %170 {strides = array<i32>} : memref<16x400xf32, #tpu.memory_space<vmem>>, vector<8x80xf32>,
    %c13 = arith.constant 13 : index
    %c0_126 = arith.constant 0 : index
    %172 = vector.load %arg16[%c13, %c0_126] : memref<24x80xf32, #tpu.memory_space<vmem>>, vector<8x80xf32>
    %c8_127 = arith.constant 8 : index
    %c80_128 = arith.constant 80 : index
    %173 = vector.load %arg17[%c8_127, %c80_128] : memref<16x400xf32, #tpu.memory_space<vmem>>, vector<8x80xf32>
    tpu.vector_store %arg17[%c8_127, %c80_128], %172 {strides = array<i32>} : memref<16x400xf32, #tpu.memory_space<vmem>>, vector<8x80xf32>,
    %c2_129 = arith.constant 2 : index
    %c0_130 = arith.constant 0 : index
    %174 = vector.load %arg16[%c2_129, %c0_130] : memref<24x80xf32, #tpu.memory_space<vmem>>, vector<8x80xf32>
    %c0_131 = arith.constant 0 : index
    %c160_132 = arith.constant 160 : index
    %175 = vector.load %arg17[%c0_131, %c160_132] : memref<16x400xf32, #tpu.memory_space<vmem>>, vector<8x80xf32>
    tpu.vector_store %arg17[%c0_131, %c160_132], %174 {strides = array<i32>} : memref<16x400xf32, #tpu.memory_space<vmem>>, vector<8x80xf32>,
    %c14_133 = arith.constant 14 : index
    %c0_134 = arith.constant 0 : index
    %176 = vector.load %arg16[%c14_133, %c0_134] : memref<24x80xf32, #tpu.memory_space<vmem>>, vector<8x80xf32>
    %c8_135 = arith.constant 8 : index
    %c160_136 = arith.constant 160 : index
    %177 = vector.load %arg17[%c8_135, %c160_136] : memref<16x400xf32, #tpu.memory_space<vmem>>, vector<8x80xf32>
    tpu.vector_store %arg17[%c8_135, %c160_136], %176 {strides = array<i32>} : memref<16x400xf32, #tpu.memory_space<vmem>>, vector<8x80xf32>,
    %c3_137 = arith.constant 3 : index
    %c0_138 = arith.constant 0 : index
    %178 = vector.load %arg16[%c3_137, %c0_138] : memref<24x80xf32, #tpu.memory_space<vmem>>, vector<8x80xf32>
    %c0_139 = arith.constant 0 : index
    %c240 = arith.constant 240 : index
    %179 = vector.load %arg17[%c0_139, %c240] : memref<16x400xf32, #tpu.memory_space<vmem>>, vector<8x80xf32>
    tpu.vector_store %arg17[%c0_139, %c240], %178 {strides = array<i32>} : memref<16x400xf32, #tpu.memory_space<vmem>>, vector<8x80xf32>,
    %c15 = arith.constant 15 : index
    %c0_140 = arith.constant 0 : index
    %180 = vector.load %arg16[%c15, %c0_140] : memref<24x80xf32, #tpu.memory_space<vmem>>, vector<8x80xf32>
    %c8_141 = arith.constant 8 : index
    %c240_142 = arith.constant 240 : index
    %181 = vector.load %arg17[%c8_141, %c240_142] : memref<16x400xf32, #tpu.memory_space<vmem>>, vector<8x80xf32>
    tpu.vector_store %arg17[%c8_141, %c240_142], %180 {strides = array<i32>} : memref<16x400xf32, #tpu.memory_space<vmem>>, vector<8x80xf32>,
    %c4_143 = arith.constant 4 : index
    %c0_144 = arith.constant 0 : index
    %182 = vector.load %arg16[%c4_143, %c0_144] : memref<24x80xf32, #tpu.memory_space<vmem>>, vector<8x80xf32>
    %c0_145 = arith.constant 0 : index
    %c320_146 = arith.constant 320 : index
    %183 = vector.load %arg17[%c0_145, %c320_146] : memref<16x400xf32, #tpu.memory_space<vmem>>, vector<8x80xf32>
    tpu.vector_store %arg17[%c0_145, %c320_146], %182 {strides = array<i32>} : memref<16x400xf32, #tpu.memory_space<vmem>>, vector<8x80xf32>,
    %c16_147 = arith.constant 16 : index
    %c0_148 = arith.constant 0 : index
    %184 = vector.load %arg16[%c16_147, %c0_148] : memref<24x80xf32, #tpu.memory_space<vmem>>, vector<8x80xf32>
    %c8_149 = arith.constant 8 : index
    %c320_150 = arith.constant 320 : index
    %185 = vector.load %arg17[%c8_149, %c320_150] : memref<16x400xf32, #tpu.memory_space<vmem>>, vector<8x80xf32>
    tpu.vector_store %arg17[%c8_149, %c320_150], %184 {strides = array<i32>} : memref<16x400xf32, #tpu.memory_space<vmem>>, vector<8x80xf32>,
    %c0_151 = arith.constant 0 : index
    %c0_152 = arith.constant 0 : index
    %186 = vector.load %arg17[%c0_151, %c0_152] : memref<16x400xf32, #tpu.memory_space<vmem>>, vector<16x400xf32>
    %c0_153 = arith.constant 0 : index
    %c0_154 = arith.constant 0 : index
    %187 = vector.load %arg9[%c0_153, %c0_154] : memref<400x40xf32, #tpu.memory_space<vmem>>, vector<400x40xf32>
    %cst_155 = arith.constant dense<0.000000e+00> : vector<16x40xf32>
    %188 = tpu.matmul %186, %187, %cst_155 {dimension_numbers = #tpu.dot_dimension_numbers<[1], [0], [0], [1], [0, 0, 1, 1], [], []>} : vector<16x400xf32>, vector<400x40xf32>, vector<16x40xf32> -> vector<16x40xf32>
    %189 = vector.broadcast %2 : vector<1x40xf32> to vector<16x40xf32>
    %190 = arith.addf %188, %189 : vector<16x40xf32>
    %cst_156 = arith.constant 0.000000e+00 : f32
    %191 = vector.broadcast %cst_156 : f32 to vector<16x40xf32>
    %192 = arith.maximumf %190, %191 : vector<16x40xf32>
    %cst_157 = arith.constant 0.000000e+00 : f32
    %193 = vector.broadcast %cst_157 : f32 to vector<24x40xf32>
    %c0_158 = arith.constant 0 : index
    %c0_159 = arith.constant 0 : index
    %194 = vector.load %arg18[%c0_158, %c0_159] : memref<24x40xf32, #tpu.memory_space<vmem>>, vector<24x40xf32>
    tpu.vector_store %arg18[%c0_158, %c0_159], %193 {strides = array<i32>} : memref<24x40xf32, #tpu.memory_space<vmem>>, vector<24x40xf32>,
    %195 = vector.extract_strided_slice %192 {offsets = [0, 0], sizes = [8, 40], strides = [1, 1]} : vector<16x40xf32> to vector<8x40xf32>
    %c2_160 = arith.constant 2 : index
    %c0_161 = arith.constant 0 : index
    %196 = vector.load %arg18[%c2_160, %c0_161] : memref<24x40xf32, #tpu.memory_space<vmem>>, vector<8x40xf32>
    tpu.vector_store %arg18[%c2_160, %c0_161], %195 {strides = array<i32>} : memref<24x40xf32, #tpu.memory_space<vmem>>, vector<8x40xf32>,
    %197 = vector.extract_strided_slice %192 {offsets = [8, 0], sizes = [8, 40], strides = [1, 1]} : vector<16x40xf32> to vector<8x40xf32>
    %c14_162 = arith.constant 14 : index
    %c0_163 = arith.constant 0 : index
    %198 = vector.load %arg18[%c14_162, %c0_163] : memref<24x40xf32, #tpu.memory_space<vmem>>, vector<8x40xf32>
    tpu.vector_store %arg18[%c14_162, %c0_163], %197 {strides = array<i32>} : memref<24x40xf32, #tpu.memory_space<vmem>>, vector<8x40xf32>,
    %c0_164 = arith.constant 0 : index
    %c0_165 = arith.constant 0 : index
    %199 = vector.load %arg18[%c0_164, %c0_165] : memref<24x40xf32, #tpu.memory_space<vmem>>, vector<8x40xf32>
    %c0_166 = arith.constant 0 : index
    %c0_167 = arith.constant 0 : index
    %200 = vector.load %arg19[%c0_166, %c0_167] : memref<16x200xf32, #tpu.memory_space<vmem>>, vector<8x40xf32>
    tpu.vector_store %arg19[%c0_166, %c0_167], %199 {strides = array<i32>} : memref<16x200xf32, #tpu.memory_space<vmem>>, vector<8x40xf32>,
    %c12_168 = arith.constant 12 : index
    %c0_169 = arith.constant 0 : index
    %201 = vector.load %arg18[%c12_168, %c0_169] : memref<24x40xf32, #tpu.memory_space<vmem>>, vector<8x40xf32>
    %c8_170 = arith.constant 8 : index
    %c0_171 = arith.constant 0 : index
    %202 = vector.load %arg19[%c8_170, %c0_171] : memref<16x200xf32, #tpu.memory_space<vmem>>, vector<8x40xf32>
    tpu.vector_store %arg19[%c8_170, %c0_171], %201 {strides = array<i32>} : memref<16x200xf32, #tpu.memory_space<vmem>>, vector<8x40xf32>,
    %c1_172 = arith.constant 1 : index
    %c0_173 = arith.constant 0 : index
    %203 = vector.load %arg18[%c1_172, %c0_173] : memref<24x40xf32, #tpu.memory_space<vmem>>, vector<8x40xf32>
    %c0_174 = arith.constant 0 : index
    %c40 = arith.constant 40 : index
    %204 = vector.load %arg19[%c0_174, %c40] : memref<16x200xf32, #tpu.memory_space<vmem>>, vector<8x40xf32>
    tpu.vector_store %arg19[%c0_174, %c40], %203 {strides = array<i32>} : memref<16x200xf32, #tpu.memory_space<vmem>>, vector<8x40xf32>,
    %c13_175 = arith.constant 13 : index
    %c0_176 = arith.constant 0 : index
    %205 = vector.load %arg18[%c13_175, %c0_176] : memref<24x40xf32, #tpu.memory_space<vmem>>, vector<8x40xf32>
    %c8_177 = arith.constant 8 : index
    %c40_178 = arith.constant 40 : index
    %206 = vector.load %arg19[%c8_177, %c40_178] : memref<16x200xf32, #tpu.memory_space<vmem>>, vector<8x40xf32>
    tpu.vector_store %arg19[%c8_177, %c40_178], %205 {strides = array<i32>} : memref<16x200xf32, #tpu.memory_space<vmem>>, vector<8x40xf32>,
    %c2_179 = arith.constant 2 : index
    %c0_180 = arith.constant 0 : index
    %207 = vector.load %arg18[%c2_179, %c0_180] : memref<24x40xf32, #tpu.memory_space<vmem>>, vector<8x40xf32>
    %c0_181 = arith.constant 0 : index
    %c80_182 = arith.constant 80 : index
    %208 = vector.load %arg19[%c0_181, %c80_182] : memref<16x200xf32, #tpu.memory_space<vmem>>, vector<8x40xf32>
    tpu.vector_store %arg19[%c0_181, %c80_182], %207 {strides = array<i32>} : memref<16x200xf32, #tpu.memory_space<vmem>>, vector<8x40xf32>,
    %c14_183 = arith.constant 14 : index
    %c0_184 = arith.constant 0 : index
    %209 = vector.load %arg18[%c14_183, %c0_184] : memref<24x40xf32, #tpu.memory_space<vmem>>, vector<8x40xf32>
    %c8_185 = arith.constant 8 : index
    %c80_186 = arith.constant 80 : index
    %210 = vector.load %arg19[%c8_185, %c80_186] : memref<16x200xf32, #tpu.memory_space<vmem>>, vector<8x40xf32>
    tpu.vector_store %arg19[%c8_185, %c80_186], %209 {strides = array<i32>} : memref<16x200xf32, #tpu.memory_space<vmem>>, vector<8x40xf32>,
    %c3_187 = arith.constant 3 : index
    %c0_188 = arith.constant 0 : index
    %211 = vector.load %arg18[%c3_187, %c0_188] : memref<24x40xf32, #tpu.memory_space<vmem>>, vector<8x40xf32>
    %c0_189 = arith.constant 0 : index
    %c120 = arith.constant 120 : index
    %212 = vector.load %arg19[%c0_189, %c120] : memref<16x200xf32, #tpu.memory_space<vmem>>, vector<8x40xf32>
    tpu.vector_store %arg19[%c0_189, %c120], %211 {strides = array<i32>} : memref<16x200xf32, #tpu.memory_space<vmem>>, vector<8x40xf32>,
    %c15_190 = arith.constant 15 : index
    %c0_191 = arith.constant 0 : index
    %213 = vector.load %arg18[%c15_190, %c0_191] : memref<24x40xf32, #tpu.memory_space<vmem>>, vector<8x40xf32>
    %c8_192 = arith.constant 8 : index
    %c120_193 = arith.constant 120 : index
    %214 = vector.load %arg19[%c8_192, %c120_193] : memref<16x200xf32, #tpu.memory_space<vmem>>, vector<8x40xf32>
    tpu.vector_store %arg19[%c8_192, %c120_193], %213 {strides = array<i32>} : memref<16x200xf32, #tpu.memory_space<vmem>>, vector<8x40xf32>,
    %c4_194 = arith.constant 4 : index
    %c0_195 = arith.constant 0 : index
    %215 = vector.load %arg18[%c4_194, %c0_195] : memref<24x40xf32, #tpu.memory_space<vmem>>, vector<8x40xf32>
    %c0_196 = arith.constant 0 : index
    %c160_197 = arith.constant 160 : index
    %216 = vector.load %arg19[%c0_196, %c160_197] : memref<16x200xf32, #tpu.memory_space<vmem>>, vector<8x40xf32>
    tpu.vector_store %arg19[%c0_196, %c160_197], %215 {strides = array<i32>} : memref<16x200xf32, #tpu.memory_space<vmem>>, vector<8x40xf32>,
    %c16_198 = arith.constant 16 : index
    %c0_199 = arith.constant 0 : index
    %217 = vector.load %arg18[%c16_198, %c0_199] : memref<24x40xf32, #tpu.memory_space<vmem>>, vector<8x40xf32>
    %c8_200 = arith.constant 8 : index
    %c160_201 = arith.constant 160 : index
    %218 = vector.load %arg19[%c8_200, %c160_201] : memref<16x200xf32, #tpu.memory_space<vmem>>, vector<8x40xf32>
    tpu.vector_store %arg19[%c8_200, %c160_201], %217 {strides = array<i32>} : memref<16x200xf32, #tpu.memory_space<vmem>>, vector<8x40xf32>,
    %c0_202 = arith.constant 0 : index
    %c0_203 = arith.constant 0 : index
    %219 = vector.load %arg19[%c0_202, %c0_203] : memref<16x200xf32, #tpu.memory_space<vmem>>, vector<16x200xf32>
    %c0_204 = arith.constant 0 : index
    %c0_205 = arith.constant 0 : index
    %220 = vector.load %arg10[%c0_204, %c0_205] : memref<200x8xf32, #tpu.memory_space<vmem>>, vector<200x8xf32>
    %cst_206 = arith.constant dense<0.000000e+00> : vector<16x8xf32>
    %221 = tpu.matmul %219, %220, %cst_206 {dimension_numbers = #tpu.dot_dimension_numbers<[1], [0], [0], [1], [0, 0, 1, 1], [], []>} : vector<16x200xf32>, vector<200x8xf32>, vector<16x8xf32> -> vector<16x8xf32>
    %222 = vector.broadcast %3 : vector<1x8xf32> to vector<16x8xf32>
    %223 = arith.addf %221, %222 : vector<16x8xf32>
    %c0_207 = arith.constant 0 : index
    %c0_208 = arith.constant 0 : index
    %224 = vector.load %arg12[%c0_207, %c0_208] : memref<16x8xf32, #tpu.memory_space<vmem>>, vector<16x8xf32>
    tpu.vector_store %arg12[%c0_207, %c0_208], %223 {strides = array<i32>} : memref<16x8xf32, #tpu.memory_space<vmem>>, vector<16x8xf32>,
    return
  }
}

</mosaic_0001>

<llo_original>
// kernel: net_forward.1
$region0: #{net_forward.1}
  #allocation0 [shape = 'u32[]', space=smem, size = 0x4, offset = 0x4, fixed_abs, tag = 'smem constant byte address 0x4 - core index']
  #allocation1 [shape = 'u32[144,128]{1,0:T(1,128)}', space=vmem, size = 0x12000, scoped, tag = 'internal scratch']
  #allocation2 [shape = 'f32[32,512]{1,0:T(8,128)}', space=vmem, size = 0x10000, scoped, tag = 'scratch operand']
  #allocation3 [shape = 'f32[40,32]{1,0:T(8,128)}', space=vmem, size = 0x5000, scoped, tag = 'scratch operand']
  #allocation4 [shape = 'f32[32,160]{1,0:T(8,128)}', space=vmem, size = 0x8000, scoped, tag = 'scratch operand']
  #allocation5 [shape = 'f32[24,80]{1,0:T(8,128)}', space=vmem, size = 0x3000, scoped, tag = 'scratch operand']
  #allocation6 [shape = 'f32[16,400]{1,0:T(8,128)}', space=vmem, size = 0x8000, scoped, tag = 'scratch operand']
  #allocation7 [shape = 'f32[24,40]{1,0:T(8,128)}', space=vmem, size = 0x3000, scoped, tag = 'scratch operand']
  #allocation8 [shape = 'f32[16,200]{1,0:T(8,128)}', space=vmem, size = 0x4000, scoped, tag = 'scratch operand']
  %s0 = inlined_call_operand.vmem [shape: f32[2,32], index: 0, kind: input, shape index: {}]
  %s1 = inlined_call_operand.vmem [shape: f32[32,32], index: 1, kind: input, shape index: {}]
  %s2 = inlined_call_operand.vmem [shape: f32[32,2], index: 2, kind: input, shape index: {}]
  %s3 = inlined_call_operand.vmem [shape: f32[512,32], index: 3, kind: input, shape index: {}]
  %s4 = inlined_call_operand.vmem [shape: f32[32,32], index: 4, kind: input, shape index: {}]
  %s5 = inlined_call_operand.vmem [shape: f32[160,80], index: 5, kind: input, shape index: {}]
  %s6 = inlined_call_operand.vmem [shape: f32[160,80], index: 6, kind: input, shape index: {}]
  %s7 = inlined_call_operand.vmem [shape: f32[16,32], index: 7, kind: input, shape index: {}]
  %s8 = inlined_call_operand.vmem [shape: f32[16,32], index: 8, kind: input, shape index: {}]
  %s9 = inlined_call_operand.vmem [shape: f32[400,40], index: 9, kind: input, shape index: {}]
  %s10 = inlined_call_operand.vmem [shape: f32[200,8], index: 10, kind: input, shape index: {}]
  %s11 = inlined_call_operand.vmem [shape: f32[1,160], index: 11, kind: input, shape index: {}]
  %s12 = inlined_call_operand.hbm [shape: f32[16,8], index: 12, kind: output, shape index: {}]
  %s13 = sld [smem:[#allocation0]]
  $region58: #{net_forward.1} parent=0
    _
  %s15 = ssub.s32 1, %s13
  %s16 = scalar_select 0, %s15, %s13
  $region1: #{net_forward.1} parent=0
    #allocation9 [shape = 'u8[8192]{0}', space=vmem, size = 0x2000, scoped, tag = 'output window, operand 0, single buffered']
    #allocation10 [shape = 's32[1]{0}', space=sflag, size = 0x4, scoped, tag = 'scoped memory for net_forward.1']
    %17 = vsyncpa [#allocation10], 0
    // Predicated region
    $region2: #{net_forward.1} parent=1 // pred_check
      _
    $region3: #{net_forward.1} parent=1 // pred_check_branch
      %19 = sbr.rel (0) target = $region5
    $region4: #{net_forward.1} parent=1 // pred_region
      _
    $region5: #{net_forward.1} parent=1 // pred_fallthru
      _
    // Predicated region
    $region6: #{net_forward.1} parent=1 // pred_check
      _
    $region7: #{net_forward.1} parent=1 // pred_check_branch
      %21 = sbr.rel (0) target = $region9
    $region8: #{net_forward.1} parent=1 // pred_region
      _
    $region9: #{net_forward.1} parent=1 // pred_fallthru
      _
    // Predicated region
    $region10: #{net_forward.1} parent=1 // pred_check
      _
    $region11: #{net_forward.1} parent=1 // pred_check_branch
      %23 = sbr.rel (0) target = $region13
    $region12: #{net_forward.1} parent=1 // pred_region
      _
    $region13: #{net_forward.1} parent=1 // pred_fallthru
      _
    // Predicated region
    $region14: #{net_forward.1} parent=1 // pred_check
      _
    $region15: #{net_forward.1} parent=1 // pred_check_branch
      %25 = sbr.rel (0) target = $region17
    $region16: #{net_forward.1} parent=1 // pred_region
      _
    $region17: #{net_forward.1} parent=1 // pred_fallthru
      _
    // Predicated region
    $region18: #{net_forward.1} parent=1 // pred_check
      _
    $region19: #{net_forward.1} parent=1 // pred_check_branch
      %27 = sbr.rel (0) target = $region21
    $region20: #{net_forward.1} parent=1 // pred_region
      _
    $region21: #{net_forward.1} parent=1 // pred_fallthru
      _
    // Predicated region
    $region22: #{net_forward.1} parent=1 // pred_check
      _
    $region23: #{net_forward.1} parent=1 // pred_check_branch
      %29 = sbr.rel (0) target = $region25
    $region24: #{net_forward.1} parent=1 // pred_region
      _
    $region25: #{net_forward.1} parent=1 // pred_fallthru
      _
    // Predicated region
    $region26: #{net_forward.1} parent=1 // pred_check
      _
    $region27: #{net_forward.1} parent=1 // pred_check_branch
      %31 = sbr.rel (0) target = $region29
    $region28: #{net_forward.1} parent=1 // pred_region
      _
    $region29: #{net_forward.1} parent=1 // pred_fallthru
      _
    // Predicated region
    $region30: #{net_forward.1} parent=1 // pred_check
      _
    $region31: #{net_forward.1} parent=1 // pred_check_branch
      %33 = sbr.rel (0) target = $region33
    $region32: #{net_forward.1} parent=1 // pred_region
      _
    $region33: #{net_forward.1} parent=1 // pred_fallthru
      _
    // Predicated region
    $region34: #{net_forward.1} parent=1 // pred_check
      _
    $region35: #{net_forward.1} parent=1 // pred_check_branch
      %35 = sbr.rel (0) target = $region37
    $region36: #{net_forward.1} parent=1 // pred_region
      _
    $region37: #{net_forward.1} parent=1 // pred_fallthru
      _
    // Predicated region
    $region38: #{net_forward.1} parent=1 // pred_check
      _
    $region39: #{net_forward.1} parent=1 // pred_check_branch
      %37 = sbr.rel (0) target = $region41
    $region40: #{net_forward.1} parent=1 // pred_region
      _
    $region41: #{net_forward.1} parent=1 // pred_fallthru
      _
    // Predicated region
    $region42: #{net_forward.1} parent=1 // pred_check
      _
    $region43: #{net_forward.1} parent=1 // pred_check_branch
      %39 = sbr.rel (0) target = $region45
    $region44: #{net_forward.1} parent=1 // pred_region
      _
    $region45: #{net_forward.1} parent=1 // pred_fallthru
      _
    // Predicated region
    $region46: #{net_forward.1} parent=1 // pred_check
      _
    $region47: #{net_forward.1} parent=1 // pred_check_branch
      %41 = sbr.rel (0) target = $region49
    $region48: #{net_forward.1} parent=1 // pred_region
      _
    $region49: #{net_forward.1} parent=1 // pred_fallthru
      _
    %v42 = vld [vmem:[%s11] sm:$0x1]
    %v43 = vld [vmem:[%s11] sm:$0x3]
    %v44 = vld [vmem:[%s11 + $0x1] sm:$0x1]
    %v45 = vld [vmem:[%s0] sm:$0x3]
    %v46 = vld [vmem:[%s1] sm:$0xff]
    %v47 = vld [vmem:[%s1 + $0x8] sm:$0xff]
    %v48 = vld [vmem:[%s1 + $0x10] sm:$0xff]
    %v49 = vld [vmem:[%s1 + $0x18] sm:$0xff]
    %v51 = vlaneseq
    %v52 = vshrl.u32 %v51, 7
    %v53 = vsub.s32 0, %v52
    %v54 = vrot.slane %v42, %v53
    %vm56 = vcmask 261120
    %v58 = vsel %vm56, %v45, 0
    %60 = vmatprep.subr.mxu0 0.0
    %61 = vmatpush1.msra.mxu0 0.0
    %62 = vmatprep.subr.mxu0 0.0
    %63 = vmatpush1.msra.mxu0 0.0
    %64 = vmatprep.subr.mxu0 0.0
    %65 = vmatpush1.msra.mxu0 0.0
    %66 = vmatprep.subr.mxu0 0.0
    %67 = vmatpush1.msra.mxu0 0.0
    %68 = vmatprep.subr.mxu0 0.0
    %69 = vmatpush1.msra.mxu0 0.0
    %70 = vmatprep.subr.mxu0 0.0
    %71 = vmatpush1.msra.mxu0 0.0
    %72 = vmatprep.subr.mxu0 0.0
    %73 = vmatpush1.msra.mxu0 0.0
    %74 = vmatprep.subr.mxu0 0.0
    %75 = vmatpush1.msra.mxu0 0.0
    %76 = vmatprep.subr.mxu0 0.0
    %77 = vmatpush1.msra.mxu0 0.0
    %78 = vmatprep.subr.mxu0 0.0
    %79 = vmatpush1.msra.mxu0 0.0
    %80 = vmatprep.subr.mxu0 0.0
    %81 = vmatpush1.msra.mxu0 0.0
    %82 = vmatprep.subr.mxu0 0.0
    %83 = vmatpush1.msra.mxu0 0.0
    %84 = vmatprep.subr.mxu0 0.0
    %85 = vmatpush1.msra.mxu0 %v49
    %86 = vmatprep.subr.mxu0 0.0
    %87 = vmatpush1.msra.mxu0 %v48
    %88 = vmatprep.subr.mxu0 0.0
    %89 = vmatpush1.msra.mxu0 %v47
    %90 = vmatprep.subr.mxu0 0.0
    %91 = vmatpush1.msra.mxu0 %v46
    %92 = vmatprep.subr.mxu0 0.0
    %93 = vmatpush2.msra.mxu0 0.0
    %94 = vmatprep.subr.mxu0 0.0
    %95 = vmatpush2.msra.mxu0 0.0
    %96 = vmatprep.subr.mxu0 0.0
    %97 = vmatpush2.msra.mxu0 0.0
    %98 = vmatprep.subr.mxu0 0.0
    %99 = vmatpush2.msra.mxu0 0.0
    %100 = vmatprep.subr.mxu0 0.0
    %101 = vmatpush2.msra.mxu0 0.0
    %102 = vmatprep.subr.mxu0 0.0
    %103 = vmatpush2.msra.mxu0 0.0
    %104 = vmatprep.subr.mxu0 0.0
    %105 = vmatpush2.msra.mxu0 0.0
    %106 = vmatprep.subr.mxu0 0.0
    %107 = vmatpush2.msra.mxu0 0.0
    %108 = vmatprep.subr.mxu0 0.0
    %109 = vmatpush2.msra.mxu0 0.0
    %110 = vmatprep.subr.mxu0 0.0
    %111 = vmatpush2.msra.mxu0 0.0
    %112 = vmatprep.subr.mxu0 0.0
    %113 = vmatpush2.msra.mxu0 0.0
    %114 = vmatprep.subr.mxu0 0.0
    %115 = vmatpush2.msra.mxu0 0.0
    %116 = vmatprep.subr.mxu0 0.0
    %117 = vmatpush2.msra.mxu0 0.0
    %118 = vmatprep.subr.mxu0 0.0
    %119 = vmatpush2.msra.mxu0 0.0
    %120 = vmatprep.subr.mxu0 0.0
    %121 = vmatpush2.msra.mxu0 0.0
    %122 = vmatprep.subr.mxu0 0.0
    %123 = vmatpush2.msra.mxu0 0.0
    %124 = vmatprep.mubr.f32.mxu0 0.0
    %125 = vmatmul.mubr.f32.gmra.mxu0 %v58
    %v126 = vpop.f32.mrf.mxu0
    %v127 = vadd.f32 %v54, %v126
    %v128 = vpop.f32.mrf.mxu0
    %129 = vdwg.mxu0
    %v130 = vmax.f32 %v127, 0.0
    %v131 = vld [vmem:[%s2] sm:$0xff]
    %v132 = vld [vmem:[%s2 + $0x8] sm:$0xff]
    %v133 = vld [vmem:[%s2 + $0x10] sm:$0xff]
    %v134 = vld [vmem:[%s2 + $0x18] sm:$0xff]
    %vm135 = vcmask 15360
    %v137 = vsel %vm135, %v131, 0
    %v140 = vsel %vm135, %v132, 0
    %v143 = vsel %vm135, %v133, 0
    %v146 = vsel %vm135, %v134, 0
    %vm148 = vcmask 1041408
    %v150 = vsel %vm148, %v130, 0
    %152 = vmatprep.subr.mxu0 0.0
    %153 = vmatpush1.msra.mxu0 0.0
    %154 = vmatprep.subr.mxu0 0.0
    %155 = vmatpush1.msra.mxu0 0.0
    %156 = vmatprep.subr.mxu0 0.0
    %157 = vmatpush1.msra.mxu0 0.0
    %158 = vmatprep.subr.mxu0 0.0
    %159 = vmatpush1.msra.mxu0 0.0
    %160 = vmatprep.subr.mxu0 0.0
    %161 = vmatpush1.msra.mxu0 0.0
    %162 = vmatprep.subr.mxu0 0.0
    %163 = vmatpush1.msra.mxu0 0.0
    %164 = vmatprep.subr.mxu0 0.0
    %165 = vmatpush1.msra.mxu0 0.0
    %166 = vmatprep.subr.mxu0 0.0
    %167 = vmatpush1.msra.mxu0 0.0
    %168 = vmatprep.subr.mxu0 0.0
    %169 = vmatpush1.msra.mxu0 0.0
    %170 = vmatprep.subr.mxu0 0.0
    %171 = vmatpush1.msra.mxu0 0.0
    %172 = vmatprep.subr.mxu0 0.0
    %173 = vmatpush1.msra.mxu0 0.0
    %174 = vmatprep.subr.mxu0 0.0
    %175 = vmatpush1.msra.mxu0 0.0
    %176 = vmatprep.subr.mxu0 0.0
    %177 = vmatpush1.msra.mxu0 0.0
    %178 = vmatprep.subr.mxu0 0.0
    %179 = vmatpush1.msra.mxu0 0.0
    %180 = vmatprep.subr.mxu0 0.0
    %181 = vmatpush1.msra.mxu0 0.0
    %182 = vmatprep.subr.mxu0 0.0
    %183 = vmatpush1.msra.mxu0 %v150
    %184 = vmatprep.subr.mxu0 0.0
    %185 = vmatpush2.msra.mxu0 0.0
    %186 = vmatprep.subr.mxu0 0.0
    %187 = vmatpush2.msra.mxu0 0.0
    %188 = vmatprep.subr.mxu0 0.0
    %189 = vmatpush2.msra.mxu0 0.0
    %190 = vmatprep.subr.mxu0 0.0
    %191 = vmatpush2.msra.mxu0 0.0
    %192 = vmatprep.subr.mxu0 0.0
    %193 = vmatpush2.msra.mxu0 0.0
    %194 = vmatprep.subr.mxu0 0.0
    %195 = vmatpush2.msra.mxu0 0.0
    %196 = vmatprep.subr.mxu0 0.0
    %197 = vmatpush2.msra.mxu0 0.0
    %198 = vmatprep.subr.mxu0 0.0
    %199 = vmatpush2.msra.mxu0 0.0
    %200 = vmatprep.subr.mxu0 0.0
    %201 = vmatpush2.msra.mxu0 0.0
    %202 = vmatprep.subr.mxu0 0.0
    %203 = vmatpush2.msra.mxu0 0.0
    %204 = vmatprep.subr.mxu0 0.0
    %205 = vmatpush2.msra.mxu0 0.0
    %206 = vmatprep.subr.mxu0 0.0
    %207 = vmatpush2.msra.mxu0 0.0
    %208 = vmatprep.subr.mxu0 0.0
    %209 = vmatpush2.msra.mxu0 0.0
    %210 = vmatprep.subr.mxu0 0.0
    %211 = vmatpush2.msra.mxu0 0.0
    %212 = vmatprep.subr.mxu0 0.0
    %213 = vmatpush2.msra.mxu0 0.0
    %214 = vmatprep.subr.mxu0 0.0
    %215 = vmatpush2.msra.mxu0 0.0
    %216 = vmatprep.mubr.f32.mxu0 0.0
    %217 = vmatmul.mubr.f32.gmra.mxu0 %v137
    %v218 = vpop.f32.mrf.mxu0
    %v219 = vadd.f32 0.0, %v218
    %v220 = vpop.f32.mrf.mxu0
    %221 = vmatprep.mubr.f32.mxu0 0.0
    %222 = vmatmul.mubr.f32.gmra.mxu0 %v140
    %v223 = vpop.f32.mrf.mxu0
    %v224 = vadd.f32 0.0, %v223
    %v225 = vpop.f32.mrf.mxu0
    %226 = vmatprep.mubr.f32.mxu0 0.0
    %227 = vmatmul.mubr.f32.gmra.mxu0 %v143
    %v228 = vpop.f32.mrf.mxu0
    %v229 = vadd.f32 0.0, %v228
    %v230 = vpop.f32.mrf.mxu0
    %231 = vmatprep.mubr.f32.mxu0 0.0
    %232 = vmatmul.mubr.f32.gmra.mxu0 %v146
    %v233 = vpop.f32.mrf.mxu0
    %v234 = vadd.f32 0.0, %v233
    %v235 = vpop.f32.mrf.mxu0
    %236 = vdwg.mxu0
    %v237 = vlaneseq
    %v238 = vshrl.u32 %v237, 7
    %v239 = vadd.s32 %v238, 8
    %v240 = vadd.s32 %v238, 16
    %v241 = vadd.s32 %v238, 24
    %vm242 = vcmp.lt.s32.totalorder %v238, 0
    %v243 = vsub.s32 0, %v238
    %v244 = vsel %vm242, %v243, %v238
    %v245 = vshrl.u32 %v244, 4
    %v246 = vand.u32 %v244, 15
    %v247 = vsub.s32 0, %v246
    %v248 = vsel %vm242, %v247, %v246
    %vm249 = vcmp.lt.s32.totalorder %v239, 0
    %v250 = vsub.s32 0, %v239
    %v251 = vsel %vm249, %v250, %v239
    %v252 = vshrl.u32 %v251, 4
    %v253 = vand.u32 %v251, 15
    %v254 = vsub.s32 0, %v253
    %v255 = vsel %vm249, %v254, %v253
    %vm256 = vcmp.lt.s32.totalorder %v240, 0
    %v257 = vsub.s32 0, %v240
    %v258 = vsel %vm256, %v257, %v240
    %v259 = vshrl.u32 %v258, 4
    %v260 = vand.u32 %v258, 15
    %v261 = vsub.s32 0, %v260
    %v262 = vsel %vm256, %v261, %v260
    %vm263 = vcmp.lt.s32.totalorder %v241, 0
    %v264 = vsub.s32 0, %v241
    %v265 = vsel %vm263, %v264, %v241
    %v266 = vshrl.u32 %v265, 4
    %v267 = vand.u32 %v265, 15
    %v268 = vsub.s32 0, %v267
    %v269 = vsel %vm263, %v268, %v267
    %vm270 = vcmp.ne.s32.totalorder %v248, 0
    %vm271 = vcmp.ne.s32.totalorder %v255, 0
    %vm272 = vcmp.ne.s32.totalorder %v262, 0
    %vm273 = vcmp.ne.s32.totalorder %v269, 0
    %vm274 = vcmp.lt.s32.totalorder %v248, 0
    %vm275 = vcmp.lt.s32.totalorder %v255, 0
    %vm276 = vcmp.lt.s32.totalorder %v262, 0
    %vm277 = vcmp.lt.s32.totalorder %v269, 0
    %vm278 = vmand %vm274, %vm270
    %vm279 = vmand %vm275, %vm271
    %vm280 = vmand %vm276, %vm272
    %vm281 = vmand %vm277, %vm273
    %v282 = vadd.s32 %v248, 16
    %v283 = vadd.s32 %v255, 16
    %v284 = vadd.s32 %v262, 16
    %v285 = vadd.s32 %v269, 16
    %v286 = vsel %vm278, %v282, %v248
    %v287 = vsel %vm279, %v283, %v255
    %v288 = vsel %vm280, %v284, %v262
    %v289 = vsel %vm281, %v285, %v269
    %vm290 = vcmp.eq.s32.totalorder %v286, 0
    %vm291 = vcmp.eq.s32.totalorder %v287, 0
    %vm292 = vcmp.eq.s32.totalorder %v288, 0
    %vm293 = vcmp.eq.s32.totalorder %v289, 0
    %v294 = vsel %vm290, %v219, 0.0
    %v295 = vsel %vm291, %v224, 0.0
    %v296 = vsel %vm292, %v229, 0.0
    %v297 = vsel %vm293, %v234, 0.0
    %298 = vst.msk [vmem:[#allocation2] sm:$0xff] %vm56, %v294
    %299 = vst.msk [vmem:[#allocation2 + $0x20] sm:$0xff] %vm56, %v295
    %300 = vst.msk [vmem:[#allocation2 + $0x40] sm:$0xff] %vm56, %v296
    %301 = vst.msk [vmem:[#allocation2 + $0x60] sm:$0xff] %vm56, %v297
    %vm302 = vcmp.eq.s32.totalorder %v286, 1
    %vm303 = vcmp.eq.s32.totalorder %v287, 1
    %vm304 = vcmp.eq.s32.totalorder %v288, 1
    %vm305 = vcmp.eq.s32.totalorder %v289, 1
    %v306 = vsel %vm302, %v219, 0.0
    %v307 = vsel %vm303, %v224, 0.0
    %v308 = vsel %vm304, %v229, 0.0
    %v309 = vsel %vm305, %v234, 0.0
    %314 = vrot.lane.b32.xlu0 %v306, 32
    %v315 = vpop.permute.xlu0 %314
    %316 = vrot.lane.b32.xlu0 %v307, 32
    %v317 = vpop.permute.xlu0 %316
    %318 = vrot.lane.b32.xlu0 %v308, 32
    %v319 = vpop.permute.xlu0 %318
    %320 = vrot.lane.b32.xlu0 %v309, 32
    %v321 = vpop.permute.xlu0 %320
    %vm326 = vcmask 523520
    %327 = vst.msk [vmem:[#allocation2] sm:$0xff] %vm326, %v315
    %328 = vst.msk [vmem:[#allocation2 + $0x20] sm:$0xff] %vm326, %v317
    %329 = vst.msk [vmem:[#allocation2 + $0x40] sm:$0xff] %vm326, %v319
    %330 = vst.msk [vmem:[#allocation2 + $0x60] sm:$0xff] %vm326, %v321
    %vm331 = vcmp.eq.s32.totalorder %v286, 2
    %vm332 = vcmp.eq.s32.totalorder %v287, 2
    %vm333 = vcmp.eq.s32.totalorder %v288, 2
    %vm334 = vcmp.eq.s32.totalorder %v289, 2
    %v335 = vsel %vm331, %v219, 0.0
    %v336 = vsel %vm332, %v224, 0.0
    %v337 = vsel %vm333, %v229, 0.0
    %v338 = vsel %vm334, %v234, 0.0
    %343 = vrot.lane.b32.xlu0 %v335, 64
    %v344 = vpop.permute.xlu0 %343
    %345 = vrot.lane.b32.xlu0 %v336, 64
    %v346 = vpop.permute.xlu0 %345
    %347 = vrot.lane.b32.xlu0 %v337, 64
    %v348 = vpop.permute.xlu0 %347
    %349 = vrot.lane.b32.xlu0 %v338, 64
    %v350 = vpop.permute.xlu0 %349
    %vm355 = vcmask 785920
    %356 = vst.msk [vmem:[#allocation2] sm:$0xff] %vm355, %v344
    %357 = vst.msk [vmem:[#allocation2 + $0x20] sm:$0xff] %vm355, %v346
    %358 = vst.msk [vmem:[#allocation2 + $0x40] sm:$0xff] %vm355, %v348
    %359 = vst.msk [vmem:[#allocation2 + $0x60] sm:$0xff] %vm355, %v350
    %vm360 = vcmp.eq.s32.totalorder %v286, 3
    %vm361 = vcmp.eq.s32.totalorder %v287, 3
    %vm362 = vcmp.eq.s32.totalorder %v288, 3
    %vm363 = vcmp.eq.s32.totalorder %v289, 3
    %v364 = vsel %vm360, %v219, 0.0
    %v365 = vsel %vm361, %v224, 0.0
    %v366 = vsel %vm362, %v229, 0.0
    %v367 = vsel %vm363, %v234, 0.0
    %372 = vrot.lane.b32.xlu0 %v364, 96
    %v373 = vpop.permute.xlu0 %372
    %374 = vrot.lane.b32.xlu0 %v365, 96
    %v375 = vpop.permute.xlu0 %374
    %376 = vrot.lane.b32.xlu0 %v366, 96
    %v377 = vpop.permute.xlu0 %376
    %378 = vrot.lane.b32.xlu0 %v367, 96
    %v379 = vpop.permute.xlu0 %378
    %vm384 = vcmask 1048320
    %385 = vst.msk [vmem:[#allocation2] sm:$0xff] %vm384, %v373
    %386 = vst.msk [vmem:[#allocation2 + $0x20] sm:$0xff] %vm384, %v375
    %387 = vst.msk [vmem:[#allocation2 + $0x40] sm:$0xff] %vm384, %v377
    %388 = vst.msk [vmem:[#allocation2 + $0x60] sm:$0xff] %vm384, %v379
    %vm389 = vcmp.eq.s32.totalorder %v286, 4
    %vm390 = vcmp.eq.s32.totalorder %v287, 4
    %vm391 = vcmp.eq.s32.totalorder %v288, 4
    %vm392 = vcmp.eq.s32.totalorder %v289, 4
    %v393 = vsel %vm389, %v219, 0.0
    %v394 = vsel %vm390, %v224, 0.0
    %v395 = vsel %vm391, %v229, 0.0
    %v396 = vsel %vm392, %v234, 0.0
    %397 = vst.msk [vmem:[#allocation2 + $0x8] sm:$0xff] %vm56, %v393
    %398 = vst.msk [vmem:[#allocation2 + $0x28] sm:$0xff] %vm56, %v394
    %399 = vst.msk [vmem:[#allocation2 + $0x48] sm:$0xff] %vm56, %v395
    %400 = vst.msk [vmem:[#allocation2 + $0x68] sm:$0xff] %vm56, %v396
    %vm401 = vcmp.eq.s32.totalorder %v286, 5
    %vm402 = vcmp.eq.s32.totalorder %v287, 5
    %vm403 = vcmp.eq.s32.totalorder %v288, 5
    %vm404 = vcmp.eq.s32.totalorder %v289, 5
    %v405 = vsel %vm401, %v219, 0.0
    %v406 = vsel %vm402, %v224, 0.0
    %v407 = vsel %vm403, %v229, 0.0
    %v408 = vsel %vm404, %v234, 0.0
    %413 = vrot.lane.b32.xlu0 %v405, 32
    %v414 = vpop.permute.xlu0 %413
    %415 = vrot.lane.b32.xlu0 %v406, 32
    %v416 = vpop.permute.xlu0 %415
    %417 = vrot.lane.b32.xlu0 %v407, 32
    %v418 = vpop.permute.xlu0 %417
    %419 = vrot.lane.b32.xlu0 %v408, 32
    %v420 = vpop.permute.xlu0 %419
    %425 = vst.msk [vmem:[#allocation2 + $0x8] sm:$0xff] %vm326, %v414
    %426 = vst.msk [vmem:[#allocation2 + $0x28] sm:$0xff] %vm326, %v416
    %427 = vst.msk [vmem:[#allocation2 + $0x48] sm:$0xff] %vm326, %v418
    %428 = vst.msk [vmem:[#allocation2 + $0x68] sm:$0xff] %vm326, %v420
    %vm429 = vcmp.eq.s32.totalorder %v286, 6
    %vm430 = vcmp.eq.s32.totalorder %v287, 6
    %vm431 = vcmp.eq.s32.totalorder %v288, 6
    %vm432 = vcmp.eq.s32.totalorder %v289, 6
    %v433 = vsel %vm429, %v219, 0.0
    %v434 = vsel %vm430, %v224, 0.0
    %v435 = vsel %vm431, %v229, 0.0
    %v436 = vsel %vm432, %v234, 0.0
    %441 = vrot.lane.b32.xlu0 %v433, 64
    %v442 = vpop.permute.xlu0 %441
    %443 = vrot.lane.b32.xlu0 %v434, 64
    %v444 = vpop.permute.xlu0 %443
    %445 = vrot.lane.b32.xlu0 %v435, 64
    %v446 = vpop.permute.xlu0 %445
    %447 = vrot.lane.b32.xlu0 %v436, 64
    %v448 = vpop.permute.xlu0 %447
    %453 = vst.msk [vmem:[#allocation2 + $0x8] sm:$0xff] %vm355, %v442
    %454 = vst.msk [vmem:[#allocation2 + $0x28] sm:$0xff] %vm355, %v444
    %455 = vst.msk [vmem:[#allocation2 + $0x48] sm:$0xff] %vm355, %v446
    %456 = vst.msk [vmem:[#allocation2 + $0x68] sm:$0xff] %vm355, %v448
    %vm457 = vcmp.eq.s32.totalorder %v286, 7
    %vm458 = vcmp.eq.s32.totalorder %v287, 7
    %vm459 = vcmp.eq.s32.totalorder %v288, 7
    %vm460 = vcmp.eq.s32.totalorder %v289, 7
    %v461 = vsel %vm457, %v219, 0.0
    %v462 = vsel %vm458, %v224, 0.0
    %v463 = vsel %vm459, %v229, 0.0
    %v464 = vsel %vm460, %v234, 0.0
    %469 = vrot.lane.b32.xlu0 %v461, 96
    %v470 = vpop.permute.xlu0 %469
    %471 = vrot.lane.b32.xlu0 %v462, 96
    %v472 = vpop.permute.xlu0 %471
    %473 = vrot.lane.b32.xlu0 %v463, 96
    %v474 = vpop.permute.xlu0 %473
    %475 = vrot.lane.b32.xlu0 %v464, 96
    %v476 = vpop.permute.xlu0 %475
    %481 = vst.msk [vmem:[#allocation2 + $0x8] sm:$0xff] %vm384, %v470
    %482 = vst.msk [vmem:[#allocation2 + $0x28] sm:$0xff] %vm384, %v472
    %483 = vst.msk [vmem:[#allocation2 + $0x48] sm:$0xff] %vm384, %v474
    %484 = vst.msk [vmem:[#allocation2 + $0x68] sm:$0xff] %vm384, %v476
    %vm485 = vcmp.eq.s32.totalorder %v286, 8
    %vm486 = vcmp.eq.s32.totalorder %v287, 8
    %vm487 = vcmp.eq.s32.totalorder %v288, 8
    %vm488 = vcmp.eq.s32.totalorder %v289, 8
    %v489 = vsel %vm485, %v219, 0.0
    %v490 = vsel %vm486, %v224, 0.0
    %v491 = vsel %vm487, %v229, 0.0
    %v492 = vsel %vm488, %v234, 0.0
    %493 = vst.msk [vmem:[#allocation2 + $0x10] sm:$0xff] %vm56, %v489
    %494 = vst.msk [vmem:[#allocation2 + $0x30] sm:$0xff] %vm56, %v490
    %495 = vst.msk [vmem:[#allocation2 + $0x50] sm:$0xff] %vm56, %v491
    %496 = vst.msk [vmem:[#allocation2 + $0x70] sm:$0xff] %vm56, %v492
    %vm497 = vcmp.eq.s32.totalorder %v286, 9
    %vm498 = vcmp.eq.s32.totalorder %v287, 9
    %vm499 = vcmp.eq.s32.totalorder %v288, 9
    %vm500 = vcmp.eq.s32.totalorder %v289, 9
    %v501 = vsel %vm497, %v219, 0.0
    %v502 = vsel %vm498, %v224, 0.0
    %v503 = vsel %vm499, %v229, 0.0
    %v504 = vsel %vm500, %v234, 0.0
    %509 = vrot.lane.b32.xlu0 %v501, 32
    %v510 = vpop.permute.xlu0 %509
    %511 = vrot.lane.b32.xlu0 %v502, 32
    %v512 = vpop.permute.xlu0 %511
    %513 = vrot.lane.b32.xlu0 %v503, 32
    %v514 = vpop.permute.xlu0 %513
    %515 = vrot.lane.b32.xlu0 %v504, 32
    %v516 = vpop.permute.xlu0 %515
    %521 = vst.msk [vmem:[#allocation2 + $0x10] sm:$0xff] %vm326, %v510
    %522 = vst.msk [vmem:[#allocation2 + $0x30] sm:$0xff] %vm326, %v512
    %523 = vst.msk [vmem:[#allocation2 + $0x50] sm:$0xff] %vm326, %v514
    %524 = vst.msk [vmem:[#allocation2 + $0x70] sm:$0xff] %vm326, %v516
    %vm525 = vcmp.eq.s32.totalorder %v286, 10
    %vm526 = vcmp.eq.s32.totalorder %v287, 10
    %vm527 = vcmp.eq.s32.totalorder %v288, 10
    %vm528 = vcmp.eq.s32.totalorder %v289, 10
    %v529 = vsel %vm525, %v219, 0.0
    %v530 = vsel %vm526, %v224, 0.0
    %v531 = vsel %vm527, %v229, 0.0
    %v532 = vsel %vm528, %v234, 0.0
    %537 = vrot.lane.b32.xlu0 %v529, 64
    %v538 = vpop.permute.xlu0 %537
    %539 = vrot.lane.b32.xlu0 %v530, 64
    %v540 = vpop.permute.xlu0 %539
    %541 = vrot.lane.b32.xlu0 %v531, 64
    %v542 = vpop.permute.xlu0 %541
    %543 = vrot.lane.b32.xlu0 %v532, 64
    %v544 = vpop.permute.xlu0 %543
    %549 = vst.msk [vmem:[#allocation2 + $0x10] sm:$0xff] %vm355, %v538
    %550 = vst.msk [vmem:[#allocation2 + $0x30] sm:$0xff] %vm355, %v540
    %551 = vst.msk [vmem:[#allocation2 + $0x50] sm:$0xff] %vm355, %v542
    %552 = vst.msk [vmem:[#allocation2 + $0x70] sm:$0xff] %vm355, %v544
    %vm553 = vcmp.eq.s32.totalorder %v286, 11
    %vm554 = vcmp.eq.s32.totalorder %v287, 11
    %vm555 = vcmp.eq.s32.totalorder %v288, 11
    %vm556 = vcmp.eq.s32.totalorder %v289, 11
    %v557 = vsel %vm553, %v219, 0.0
    %v558 = vsel %vm554, %v224, 0.0
    %v559 = vsel %vm555, %v229, 0.0
    %v560 = vsel %vm556, %v234, 0.0
    %565 = vrot.lane.b32.xlu0 %v557, 96
    %v566 = vpop.permute.xlu0 %565
    %567 = vrot.lane.b32.xlu0 %v558, 96
    %v568 = vpop.permute.xlu0 %567
    %569 = vrot.lane.b32.xlu0 %v559, 96
    %v570 = vpop.permute.xlu0 %569
    %571 = vrot.lane.b32.xlu0 %v560, 96
    %v572 = vpop.permute.xlu0 %571
    %577 = vst.msk [vmem:[#allocation2 + $0x10] sm:$0xff] %vm384, %v566
    %578 = vst.msk [vmem:[#allocation2 + $0x30] sm:$0xff] %vm384, %v568
    %579 = vst.msk [vmem:[#allocation2 + $0x50] sm:$0xff] %vm384, %v570
    %580 = vst.msk [vmem:[#allocation2 + $0x70] sm:$0xff] %vm384, %v572
    %vm581 = vcmp.eq.s32.totalorder %v286, 12
    %vm582 = vcmp.eq.s32.totalorder %v287, 12
    %vm583 = vcmp.eq.s32.totalorder %v288, 12
    %vm584 = vcmp.eq.s32.totalorder %v289, 12
    %v585 = vsel %vm581, %v219, 0.0
    %v586 = vsel %vm582, %v224, 0.0
    %v587 = vsel %vm583, %v229, 0.0
    %v588 = vsel %vm584, %v234, 0.0
    %589 = vst.msk [vmem:[#allocation2 + $0x18] sm:$0xff] %vm56, %v585
    %590 = vst.msk [vmem:[#allocation2 + $0x38] sm:$0xff] %vm56, %v586
    %591 = vst.msk [vmem:[#allocation2 + $0x58] sm:$0xff] %vm56, %v587
    %592 = vst.msk [vmem:[#allocation2 + $0x78] sm:$0xff] %vm56, %v588
    %vm593 = vcmp.eq.s32.totalorder %v286, 13
    %vm594 = vcmp.eq.s32.totalorder %v287, 13
    %vm595 = vcmp.eq.s32.totalorder %v288, 13
    %vm596 = vcmp.eq.s32.totalorder %v289, 13
    %v597 = vsel %vm593, %v219, 0.0
    %v598 = vsel %vm594, %v224, 0.0
    %v599 = vsel %vm595, %v229, 0.0
    %v600 = vsel %vm596, %v234, 0.0
    %605 = vrot.lane.b32.xlu0 %v597, 32
    %v606 = vpop.permute.xlu0 %605
    %607 = vrot.lane.b32.xlu0 %v598, 32
    %v608 = vpop.permute.xlu0 %607
    %609 = vrot.lane.b32.xlu0 %v599, 32
    %v610 = vpop.permute.xlu0 %609
    %611 = vrot.lane.b32.xlu0 %v600, 32
    %v612 = vpop.permute.xlu0 %611
    %617 = vst.msk [vmem:[#allocation2 + $0x18] sm:$0xff] %vm326, %v606
    %618 = vst.msk [vmem:[#allocation2 + $0x38] sm:$0xff] %vm326, %v608
    %619 = vst.msk [vmem:[#allocation2 + $0x58] sm:$0xff] %vm326, %v610
    %620 = vst.msk [vmem:[#allocation2 + $0x78] sm:$0xff] %vm326, %v612
    %vm621 = vcmp.eq.s32.totalorder %v286, 14
    %vm622 = vcmp.eq.s32.totalorder %v287, 14
    %vm623 = vcmp.eq.s32.totalorder %v288, 14
    %vm624 = vcmp.eq.s32.totalorder %v289, 14
    %v625 = vsel %vm621, %v219, 0.0
    %v626 = vsel %vm622, %v224, 0.0
    %v627 = vsel %vm623, %v229, 0.0
    %v628 = vsel %vm624, %v234, 0.0
    %633 = vrot.lane.b32.xlu0 %v625, 64
    %v634 = vpop.permute.xlu0 %633
    %635 = vrot.lane.b32.xlu0 %v626, 64
    %v636 = vpop.permute.xlu0 %635
    %637 = vrot.lane.b32.xlu0 %v627, 64
    %v638 = vpop.permute.xlu0 %637
    %639 = vrot.lane.b32.xlu0 %v628, 64
    %v640 = vpop.permute.xlu0 %639
    %645 = vst.msk [vmem:[#allocation2 + $0x18] sm:$0xff] %vm355, %v634
    %646 = vst.msk [vmem:[#allocation2 + $0x38] sm:$0xff] %vm355, %v636
    %647 = vst.msk [vmem:[#allocation2 + $0x58] sm:$0xff] %vm355, %v638
    %648 = vst.msk [vmem:[#allocation2 + $0x78] sm:$0xff] %vm355, %v640
    %vm649 = vcmp.eq.s32.totalorder %v286, 15
    %vm650 = vcmp.eq.s32.totalorder %v287, 15
    %vm651 = vcmp.eq.s32.totalorder %v288, 15
    %vm652 = vcmp.eq.s32.totalorder %v289, 15
    %v653 = vsel %vm649, %v219, 0.0
    %v654 = vsel %vm650, %v224, 0.0
    %v655 = vsel %vm651, %v229, 0.0
    %v656 = vsel %vm652, %v234, 0.0
    %661 = vrot.lane.b32.xlu0 %v653, 96
    %v662 = vpop.permute.xlu0 %661
    %663 = vrot.lane.b32.xlu0 %v654, 96
    %v664 = vpop.permute.xlu0 %663
    %665 = vrot.lane.b32.xlu0 %v655, 96
    %v666 = vpop.permute.xlu0 %665
    %667 = vrot.lane.b32.xlu0 %v656, 96
    %v668 = vpop.permute.xlu0 %667
    %673 = vst.msk [vmem:[#allocation2 + $0x18] sm:$0xff] %vm384, %v662
    %674 = vst.msk [vmem:[#allocation2 + $0x38] sm:$0xff] %vm384, %v664
    %675 = vst.msk [vmem:[#allocation2 + $0x58] sm:$0xff] %vm384, %v666
    %676 = vst.msk [vmem:[#allocation2 + $0x78] sm:$0xff] %vm384, %v668
    %v677 = vld [vmem:[#allocation2] sm:$0xff]
    %v678 = vld [vmem:[#allocation2 + $0x8] sm:$0xff]
    %v679 = vld [vmem:[#allocation2 + $0x10] sm:$0xff]
    %v680 = vld [vmem:[#allocation2 + $0x18] sm:$0xff]
    %v681 = vld [vmem:[#allocation2 + $0x20] sm:$0xff]
    %v682 = vld [vmem:[#allocation2 + $0x28] sm:$0xff]
    %v683 = vld [vmem:[#allocation2 + $0x30] sm:$0xff]
    %v684 = vld [vmem:[#allocation2 + $0x38] sm:$0xff]
    %v685 = vld [vmem:[#allocation2 + $0x40] sm:$0xff]
    %v686 = vld [vmem:[#allocation2 + $0x48] sm:$0xff]
    %v687 = vld [vmem:[#allocation2 + $0x50] sm:$0xff]
    %v688 = vld [vmem:[#allocation2 + $0x58] sm:$0xff]
    %v689 = vld [vmem:[#allocation2 + $0x60] sm:$0xff]
    %v690 = vld [vmem:[#allocation2 + $0x68] sm:$0xff]
    %v691 = vld [vmem:[#allocation2 + $0x70] sm:$0xff]
    %v692 = vld [vmem:[#allocation2 + $0x78] sm:$0xff]
    %v693 = vld [vmem:[%s3] sm:$0xff]
    %v694 = vld [vmem:[%s3 + $0x8] sm:$0xff]
    %v695 = vld [vmem:[%s3 + $0x10] sm:$0xff]
    %v696 = vld [vmem:[%s3 + $0x18] sm:$0xff]
    %v697 = vld [vmem:[%s3 + $0x20] sm:$0xff]
    %v698 = vld [vmem:[%s3 + $0x28] sm:$0xff]
    %v699 = vld [vmem:[%s3 + $0x30] sm:$0xff]
    %v700 = vld [vmem:[%s3 + $0x38] sm:$0xff]
    %v701 = vld [vmem:[%s3 + $0x40] sm:$0xff]
    %v702 = vld [vmem:[%s3 + $0x48] sm:$0xff]
    %v703 = vld [vmem:[%s3 + $0x50] sm:$0xff]
    %v704 = vld [vmem:[%s3 + $0x58] sm:$0xff]
    %v705 = vld [vmem:[%s3 + $0x60] sm:$0xff]
    %v706 = vld [vmem:[%s3 + $0x68] sm:$0xff]
    %v707 = vld [vmem:[%s3 + $0x70] sm:$0xff]
    %v708 = vld [vmem:[%s3 + $0x78] sm:$0xff]
    %v709 = vld [vmem:[%s3 + $0x80] sm:$0xff]
    %v710 = vld [vmem:[%s3 + $0x88] sm:$0xff]
    %v711 = vld [vmem:[%s3 + $0x90] sm:$0xff]
    %v712 = vld [vmem:[%s3 + $0x98] sm:$0xff]
    %v713 = vld [vmem:[%s3 + $0xa0] sm:$0xff]
    %v714 = vld [vmem:[%s3 + $0xa8] sm:$0xff]
    %v715 = vld [vmem:[%s3 + $0xb0] sm:$0xff]
    %v716 = vld [vmem:[%s3 + $0xb8] sm:$0xff]
    %v717 = vld [vmem:[%s3 + $0xc0] sm:$0xff]
    %v718 = vld [vmem:[%s3 + $0xc8] sm:$0xff]
    %v719 = vld [vmem:[%s3 + $0xd0] sm:$0xff]
    %v720 = vld [vmem:[%s3 + $0xd8] sm:$0xff]
    %v721 = vld [vmem:[%s3 + $0xe0] sm:$0xff]
    %v722 = vld [vmem:[%s3 + $0xe8] sm:$0xff]
    %v723 = vld [vmem:[%s3 + $0xf0] sm:$0xff]
    %v724 = vld [vmem:[%s3 + $0xf8] sm:$0xff]
    %v725 = vld [vmem:[%s3 + $0x100] sm:$0xff]
    %v726 = vld [vmem:[%s3 + $0x108] sm:$0xff]
    %v727 = vld [vmem:[%s3 + $0x110] sm:$0xff]
    %v728 = vld [vmem:[%s3 + $0x118] sm:$0xff]
    %v729 = vld [vmem:[%s3 + $0x120] sm:$0xff]
    %v730 = vld [vmem:[%s3 + $0x128] sm:$0xff]
    %v731 = vld [vmem:[%s3 + $0x130] sm:$0xff]
    %v732 = vld [vmem:[%s3 + $0x138] sm:$0xff]
    %v733 = vld [vmem:[%s3 + $0x140] sm:$0xff]
    %v734 = vld [vmem:[%s3 + $0x148] sm:$0xff]
    %v735 = vld [vmem:[%s3 + $0x150] sm:$0xff]
    %v736 = vld [vmem:[%s3 + $0x158] sm:$0xff]
    %v737 = vld [vmem:[%s3 + $0x160] sm:$0xff]
    %v738 = vld [vmem:[%s3 + $0x168] sm:$0xff]
    %v739 = vld [vmem:[%s3 + $0x170] sm:$0xff]
    %v740 = vld [vmem:[%s3 + $0x178] sm:$0xff]
    %v741 = vld [vmem:[%s3 + $0x180] sm:$0xff]
    %v742 = vld [vmem:[%s3 + $0x188] sm:$0xff]
    %v743 = vld [vmem:[%s3 + $0x190] sm:$0xff]
    %v744 = vld [vmem:[%s3 + $0x198] sm:$0xff]
    %v745 = vld [vmem:[%s3 + $0x1a0] sm:$0xff]
    %v746 = vld [vmem:[%s3 + $0x1a8] sm:$0xff]
    %v747 = vld [vmem:[%s3 + $0x1b0] sm:$0xff]
    %v748 = vld [vmem:[%s3 + $0x1b8] sm:$0xff]
    %v749 = vld [vmem:[%s3 + $0x1c0] sm:$0xff]
    %v750 = vld [vmem:[%s3 + $0x1c8] sm:$0xff]
    %v751 = vld [vmem:[%s3 + $0x1d0] sm:$0xff]
    %v752 = vld [vmem:[%s3 + $0x1d8] sm:$0xff]
    %v753 = vld [vmem:[%s3 + $0x1e0] sm:$0xff]
    %v754 = vld [vmem:[%s3 + $0x1e8] sm:$0xff]
    %v755 = vld [vmem:[%s3 + $0x1f0] sm:$0xff]
    %v756 = vld [vmem:[%s3 + $0x1f8] sm:$0xff]
    %v757 = vld [vmem:[%s4] sm:$0xff]
    %v758 = vld [vmem:[%s4 + $0x8] sm:$0xff]
    %v759 = vld [vmem:[%s4 + $0x10] sm:$0xff]
    %v760 = vld [vmem:[%s4 + $0x18] sm:$0xff]
    %761 = vmatprep.subr.mxu0 0.0
    %762 = vmatpush1.msra.mxu0 %v708
    %763 = vmatprep.subr.mxu0 0.0
    %764 = vmatpush1.msra.mxu0 %v707
    %765 = vmatprep.subr.mxu0 0.0
    %766 = vmatpush1.msra.mxu0 %v706
    %767 = vmatprep.subr.mxu0 0.0
    %768 = vmatpush1.msra.mxu0 %v705
    %769 = vmatprep.subr.mxu0 0.0
    %770 = vmatpush1.msra.mxu0 %v704
    %771 = vmatprep.subr.mxu0 0.0
    %772 = vmatpush1.msra.mxu0 %v703
    %773 = vmatprep.subr.mxu0 0.0
    %774 = vmatpush1.msra.mxu0 %v702
    %775 = vmatprep.subr.mxu0 0.0
    %776 = vmatpush1.msra.mxu0 %v701
    %777 = vmatprep.subr.mxu0 0.0
    %778 = vmatpush1.msra.mxu0 %v700
    %779 = vmatprep.subr.mxu0 0.0
    %780 = vmatpush1.msra.mxu0 %v699
    %781 = vmatprep.subr.mxu0 0.0
    %782 = vmatpush1.msra.mxu0 %v698
    %783 = vmatprep.subr.mxu0 0.0
    %784 = vmatpush1.msra.mxu0 %v697
    %785 = vmatprep.subr.mxu0 0.0
    %786 = vmatpush1.msra.mxu0 %v696
    %787 = vmatprep.subr.mxu0 0.0
    %788 = vmatpush1.msra.mxu0 %v695
    %789 = vmatprep.subr.mxu0 0.0
    %790 = vmatpush1.msra.mxu0 %v694
    %791 = vmatprep.subr.mxu0 0.0
    %792 = vmatpush1.msra.mxu0 %v693
    %793 = vmatprep.subr.mxu0 0.0
    %794 = vmatpush2.msra.mxu0 %v724
    %795 = vmatprep.subr.mxu0 0.0
    %796 = vmatpush2.msra.mxu0 %v723
    %797 = vmatprep.subr.mxu0 0.0
    %798 = vmatpush2.msra.mxu0 %v722
    %799 = vmatprep.subr.mxu0 0.0
    %800 = vmatpush2.msra.mxu0 %v721
    %801 = vmatprep.subr.mxu0 0.0
    %802 = vmatpush2.msra.mxu0 %v720
    %803 = vmatprep.subr.mxu0 0.0
    %804 = vmatpush2.msra.mxu0 %v719
    %805 = vmatprep.subr.mxu0 0.0
    %806 = vmatpush2.msra.mxu0 %v718
    %807 = vmatprep.subr.mxu0 0.0
    %808 = vmatpush2.msra.mxu0 %v717
    %809 = vmatprep.subr.mxu0 0.0
    %810 = vmatpush2.msra.mxu0 %v716
    %811 = vmatprep.subr.mxu0 0.0
    %812 = vmatpush2.msra.mxu0 %v715
    %813 = vmatprep.subr.mxu0 0.0
    %814 = vmatpush2.msra.mxu0 %v714
    %815 = vmatprep.subr.mxu0 0.0
    %816 = vmatpush2.msra.mxu0 %v713
    %817 = vmatprep.subr.mxu0 0.0
    %818 = vmatpush2.msra.mxu0 %v712
    %819 = vmatprep.subr.mxu0 0.0
    %820 = vmatpush2.msra.mxu0 %v711
    %821 = vmatprep.subr.mxu0 0.0
    %822 = vmatpush2.msra.mxu0 %v710
    %823 = vmatprep.subr.mxu0 0.0
    %824 = vmatpush2.msra.mxu0 %v709
    %825 = vmatprep.mubr.f32.mxu0 %v678
    %826 = vmatmul.mubr.f32.gmra.mxu0 %v677
    %v827 = vpop.f32.mrf.mxu0
    %v828 = vadd.f32 %v757, %v827
    %v829 = vpop.f32.mrf.mxu0
    %830 = vmatprep.mubr.f32.mxu0 %v682
    %831 = vmatmul.mubr.f32.gmra.mxu0 %v681
    %v832 = vpop.f32.mrf.mxu0
    %v833 = vadd.f32 %v758, %v832
    %v834 = vpop.f32.mrf.mxu0
    %835 = vmatprep.mubr.f32.mxu0 %v686
    %836 = vmatmul.mubr.f32.gmra.mxu0 %v685
    %v837 = vpop.f32.mrf.mxu0
    %v838 = vadd.f32 %v759, %v837
    %v839 = vpop.f32.mrf.mxu0
    %840 = vmatprep.mubr.f32.mxu0 %v690
    %841 = vmatmul.mubr.f32.gmra.mxu0 %v689
    %v842 = vpop.f32.mrf.mxu0
    %v843 = vadd.f32 %v760, %v842
    %v844 = vpop.f32.mrf.mxu0
    %845 = vdwg.mxu0
    %846 = vmatprep.subr.mxu0 0.0
    %847 = vmatpush1.msra.mxu0 %v740
    %848 = vmatprep.subr.mxu0 0.0
    %849 = vmatpush1.msra.mxu0 %v739
    %850 = vmatprep.subr.mxu0 0.0
    %851 = vmatpush1.msra.mxu0 %v738
    %852 = vmatprep.subr.mxu0 0.0
    %853 = vmatpush1.msra.mxu0 %v737
    %854 = vmatprep.subr.mxu0 0.0
    %855 = vmatpush1.msra.mxu0 %v736
    %856 = vmatprep.subr.mxu0 0.0
    %857 = vmatpush1.msra.mxu0 %v735
    %858 = vmatprep.subr.mxu0 0.0
    %859 = vmatpush1.msra.mxu0 %v734
    %860 = vmatprep.subr.mxu0 0.0
    %861 = vmatpush1.msra.mxu0 %v733
    %862 = vmatprep.subr.mxu0 0.0
    %863 = vmatpush1.msra.mxu0 %v732
    %864 = vmatprep.subr.mxu0 0.0
    %865 = vmatpush1.msra.mxu0 %v731
    %866 = vmatprep.subr.mxu0 0.0
    %867 = vmatpush1.msra.mxu0 %v730
    %868 = vmatprep.subr.mxu0 0.0
    %869 = vmatpush1.msra.mxu0 %v729
    %870 = vmatprep.subr.mxu0 0.0
    %871 = vmatpush1.msra.mxu0 %v728
    %872 = vmatprep.subr.mxu0 0.0
    %873 = vmatpush1.msra.mxu0 %v727
    %874 = vmatprep.subr.mxu0 0.0
    %875 = vmatpush1.msra.mxu0 %v726
    %876 = vmatprep.subr.mxu0 0.0
    %877 = vmatpush1.msra.mxu0 %v725
    %878 = vmatprep.subr.mxu0 0.0
    %879 = vmatpush2.msra.mxu0 %v756
    %880 = vmatprep.subr.mxu0 0.0
    %881 = vmatpush2.msra.mxu0 %v755
    %882 = vmatprep.subr.mxu0 0.0
    %883 = vmatpush2.msra.mxu0 %v754
    %884 = vmatprep.subr.mxu0 0.0
    %885 = vmatpush2.msra.mxu0 %v753
    %886 = vmatprep.subr.mxu0 0.0
    %887 = vmatpush2.msra.mxu0 %v752
    %888 = vmatprep.subr.mxu0 0.0
    %889 = vmatpush2.msra.mxu0 %v751
    %890 = vmatprep.subr.mxu0 0.0
    %891 = vmatpush2.msra.mxu0 %v750
    %892 = vmatprep.subr.mxu0 0.0
    %893 = vmatpush2.msra.mxu0 %v749
    %894 = vmatprep.subr.mxu0 0.0
    %895 = vmatpush2.msra.mxu0 %v748
    %896 = vmatprep.subr.mxu0 0.0
    %897 = vmatpush2.msra.mxu0 %v747
    %898 = vmatprep.subr.mxu0 0.0
    %899 = vmatpush2.msra.mxu0 %v746
    %900 = vmatprep.subr.mxu0 0.0
    %901 = vmatpush2.msra.mxu0 %v745
    %902 = vmatprep.subr.mxu0 0.0
    %903 = vmatpush2.msra.mxu0 %v744
    %904 = vmatprep.subr.mxu0 0.0
    %905 = vmatpush2.msra.mxu0 %v743
    %906 = vmatprep.subr.mxu0 0.0
    %907 = vmatpush2.msra.mxu0 %v742
    %908 = vmatprep.subr.mxu0 0.0
    %909 = vmatpush2.msra.mxu0 %v741
    %910 = vmatprep.mubr.f32.mxu0 %v680
    %911 = vmatmul.mubr.f32.gmra.mxu0 %v679
    %v912 = vpop.f32.mrf.mxu0
    %v913 = vadd.f32 %v828, %v912
    %v914 = vpop.f32.mrf.mxu0
    %915 = vmatprep.mubr.f32.mxu0 %v684
    %916 = vmatmul.mubr.f32.gmra.mxu0 %v683
    %v917 = vpop.f32.mrf.mxu0
    %v918 = vadd.f32 %v833, %v917
    %v919 = vpop.f32.mrf.mxu0
    %920 = vmatprep.mubr.f32.mxu0 %v688
    %921 = vmatmul.mubr.f32.gmra.mxu0 %v687
    %v922 = vpop.f32.mrf.mxu0
    %v923 = vadd.f32 %v838, %v922
    %v924 = vpop.f32.mrf.mxu0
    %925 = vmatprep.mubr.f32.mxu0 %v692
    %926 = vmatmul.mubr.f32.gmra.mxu0 %v691
    %v927 = vpop.f32.mrf.mxu0
    %v928 = vadd.f32 %v843, %v927
    %v929 = vpop.f32.mrf.mxu0
    %930 = vdwg.mxu0
    %v931 = vmax.f32 %v913, 0.0
    %v932 = vmax.f32 %v918, 0.0
    %v933 = vmax.f32 %v923, 0.0
    %v934 = vmax.f32 %v928, 0.0
    %935 = vst.msk [vmem:[#allocation3] sm:$0xff] %vm56, 0.0
    %936 = vst.msk [vmem:[#allocation3 + $0x8] sm:$0xff] %vm56, 0.0
    %937 = vst.msk [vmem:[#allocation3 + $0x10] sm:$0xff] %vm56, 0.0
    %938 = vst.msk [vmem:[#allocation3 + $0x18] sm:$0xff] %vm56, 0.0
    %939 = vst.msk [vmem:[#allocation3 + $0x20] sm:$0xff] %vm56, 0.0
    %940 = vst.msk [vmem:[#allocation3 + $0x2] sm:$0xff] %vm56, %v931
    %941 = vst.msk [vmem:[#allocation3 + $0xa] sm:$0xff] %vm56, %v932
    %942 = vst.msk [vmem:[#allocation3 + $0x16] sm:$0xff] %vm56, %v933
    %943 = vst.msk [vmem:[#allocation3 + $0x1e] sm:$0xff] %vm56, %v934
    %v944 = vld [vmem:[#allocation3] sm:$0xff]
    %v945 = vld [vmem:[#allocation3 + $0x8] sm:$0xff]
    %946 = vst.msk [vmem:[#allocation4] sm:$0xff] %vm56, %v944
    %947 = vst.msk [vmem:[#allocation4 + $0x10] sm:$0xff] %vm56, %v945
    %v948 = vld [vmem:[#allocation3 + $0x14] sm:$0xff]
    %v949 = vld [vmem:[#allocation3 + $0x1c] sm:$0xff]
    %950 = vst.msk [vmem:[#allocation4 + $0x20] sm:$0xff] %vm56, %v948
    %951 = vst.msk [vmem:[#allocation4 + $0x30] sm:$0xff] %vm56, %v949
    %v952 = vld [vmem:[#allocation3 + $0x1] sm:$0xff]
    %v953 = vld [vmem:[#allocation3 + $0x9] sm:$0xff]
    %956 = vrot.lane.b32.xlu0 %v952, 32
    %v957 = vpop.permute.xlu0 %956
    %958 = vrot.lane.b32.xlu0 %v953, 32
    %v959 = vpop.permute.xlu0 %958
    %962 = vst.msk [vmem:[#allocation4] sm:$0xff] %vm326, %v957
    %963 = vst.msk [vmem:[#allocation4 + $0x10] sm:$0xff] %vm326, %v959
    %v964 = vld [vmem:[#allocation3 + $0x15] sm:$0xff]
    %v965 = vld [vmem:[#allocation3 + $0x1d] sm:$0xff]
    %968 = vrot.lane.b32.xlu0 %v964, 32
    %v969 = vpop.permute.xlu0 %968
    %970 = vrot.lane.b32.xlu0 %v965, 32
    %v971 = vpop.permute.xlu0 %970
    %974 = vst.msk [vmem:[#allocation4 + $0x20] sm:$0xff] %vm326, %v969
    %975 = vst.msk [vmem:[#allocation4 + $0x30] sm:$0xff] %vm326, %v971
    %v976 = vld [vmem:[#allocation3 + $0x2] sm:$0xff]
    %v977 = vld [vmem:[#allocation3 + $0xa] sm:$0xff]
    %980 = vrot.lane.b32.xlu0 %v976, 64
    %v981 = vpop.permute.xlu0 %980
    %982 = vrot.lane.b32.xlu0 %v977, 64
    %v983 = vpop.permute.xlu0 %982
    %986 = vst.msk [vmem:[#allocation4] sm:$0xff] %vm355, %v981
    %987 = vst.msk [vmem:[#allocation4 + $0x10] sm:$0xff] %vm355, %v983
    %v988 = vld [vmem:[#allocation3 + $0x16] sm:$0xff]
    %v989 = vld [vmem:[#allocation3 + $0x1e] sm:$0xff]
    %992 = vrot.lane.b32.xlu0 %v988, 64
    %v993 = vpop.permute.xlu0 %992
    %994 = vrot.lane.b32.xlu0 %v989, 64
    %v995 = vpop.permute.xlu0 %994
    %998 = vst.msk [vmem:[#allocation4 + $0x20] sm:$0xff] %vm355, %v993
    %999 = vst.msk [vmem:[#allocation4 + $0x30] sm:$0xff] %vm355, %v995
    %v1000 = vld [vmem:[#allocation3 + $0x3] sm:$0xff]
    %v1001 = vld [vmem:[#allocation3 + $0xb] sm:$0xff]
    %1004 = vrot.lane.b32.xlu0 %v1000, 96
    %v1005 = vpop.permute.xlu0 %1004
    %1006 = vrot.lane.b32.xlu0 %v1001, 96
    %v1007 = vpop.permute.xlu0 %1006
    %1010 = vst.msk [vmem:[#allocation4] sm:$0xff] %vm384, %v1005
    %1011 = vst.msk [vmem:[#allocation4 + $0x10] sm:$0xff] %vm384, %v1007
    %v1012 = vld [vmem:[#allocation3 + $0x17] sm:$0xff]
    %v1013 = vld [vmem:[#allocation3 + $0x1f] sm:$0xff]
    %1016 = vrot.lane.b32.xlu0 %v1012, 96
    %v1017 = vpop.permute.xlu0 %1016
    %1018 = vrot.lane.b32.xlu0 %v1013, 96
    %v1019 = vpop.permute.xlu0 %1018
    %1022 = vst.msk [vmem:[#allocation4 + $0x20] sm:$0xff] %vm384, %v1017
    %1023 = vst.msk [vmem:[#allocation4 + $0x30] sm:$0xff] %vm384, %v1019
    %v1024 = vld [vmem:[#allocation3 + $0x4] sm:$0xff]
    %v1025 = vld [vmem:[#allocation3 + $0xc] sm:$0xff]
    %1026 = vst.msk [vmem:[#allocation4 + $0x8] sm:$0xff] %vm56, %v1024
    %1027 = vst.msk [vmem:[#allocation4 + $0x18] sm:$0xff] %vm56, %v1025
    %v1028 = vld [vmem:[#allocation3 + $0x18] sm:$0xff]
    %v1029 = vld [vmem:[#allocation3 + $0x20] sm:$0xff]
    %1030 = vst.msk [vmem:[#allocation4 + $0x28] sm:$0xff] %vm56, %v1028
    %1031 = vst.msk [vmem:[#allocation4 + $0x38] sm:$0xff] %vm56, %v1029
    %v1032 = vld [vmem:[#allocation4] sm:$0xff]
    %v1033 = vld [vmem:[#allocation4 + $0x8] sm:$0xff]
    %v1034 = vld [vmem:[#allocation4 + $0x10] sm:$0xff]
    %v1035 = vld [vmem:[#allocation4 + $0x18] sm:$0xff]
    %v1036 = vld [vmem:[#allocation4 + $0x20] sm:$0xff]
    %v1037 = vld [vmem:[#allocation4 + $0x28] sm:$0xff]
    %v1038 = vld [vmem:[#allocation4 + $0x30] sm:$0xff]
    %v1039 = vld [vmem:[#allocation4 + $0x38] sm:$0xff]
    %v1040 = vld [vmem:[%s5] sm:$0xff]
    %v1041 = vld [vmem:[%s5 + $0x8] sm:$0xff]
    %v1042 = vld [vmem:[%s5 + $0x10] sm:$0xff]
    %v1043 = vld [vmem:[%s5 + $0x18] sm:$0xff]
    %v1044 = vld [vmem:[%s5 + $0x20] sm:$0xff]
    %v1045 = vld [vmem:[%s5 + $0x28] sm:$0xff]
    %v1046 = vld [vmem:[%s5 + $0x30] sm:$0xff]
    %v1047 = vld [vmem:[%s5 + $0x38] sm:$0xff]
    %v1048 = vld [vmem:[%s5 + $0x40] sm:$0xff]
    %v1049 = vld [vmem:[%s5 + $0x48] sm:$0xff]
    %v1050 = vld [vmem:[%s5 + $0x50] sm:$0xff]
    %v1051 = vld [vmem:[%s5 + $0x58] sm:$0xff]
    %v1052 = vld [vmem:[%s5 + $0x60] sm:$0xff]
    %v1053 = vld [vmem:[%s5 + $0x68] sm:$0xff]
    %v1054 = vld [vmem:[%s5 + $0x70] sm:$0xff]
    %v1055 = vld [vmem:[%s5 + $0x78] sm:$0xff]
    %v1056 = vld [vmem:[%s5 + $0x80] sm:$0xff]
    %v1057 = vld [vmem:[%s5 + $0x88] sm:$0xff]
    %v1058 = vld [vmem:[%s5 + $0x90] sm:$0xff]
    %v1059 = vld [vmem:[%s5 + $0x98] sm:$0xff]
    %1060 = vrot.lane.b32.xlu0 %v54, 96
    %v1061 = vpop.permute.xlu0 %1060
    %v1064 = vsel %vm56, %v1033, 0
    %v1067 = vsel %vm56, %v1035, 0
    %v1070 = vsel %vm56, %v1037, 0
    %v1073 = vsel %vm56, %v1039, 0
    %1075 = vmatprep.subr.mxu0 0.0
    %1076 = vmatpush1.msra.mxu0 %v1055
    %1077 = vmatprep.subr.mxu0 0.0
    %1078 = vmatpush1.msra.mxu0 %v1054
    %1079 = vmatprep.subr.mxu0 0.0
    %1080 = vmatpush1.msra.mxu0 %v1053
    %1081 = vmatprep.subr.mxu0 0.0
    %1082 = vmatpush1.msra.mxu0 %v1052
    %1083 = vmatprep.subr.mxu0 0.0
    %1084 = vmatpush1.msra.mxu0 %v1051
    %1085 = vmatprep.subr.mxu0 0.0
    %1086 = vmatpush1.msra.mxu0 %v1050
    %1087 = vmatprep.subr.mxu0 0.0
    %1088 = vmatpush1.msra.mxu0 %v1049
    %1089 = vmatprep.subr.mxu0 0.0
    %1090 = vmatpush1.msra.mxu0 %v1048
    %1091 = vmatprep.subr.mxu0 0.0
    %1092 = vmatpush1.msra.mxu0 %v1047
    %1093 = vmatprep.subr.mxu0 0.0
    %1094 = vmatpush1.msra.mxu0 %v1046
    %1095 = vmatprep.subr.mxu0 0.0
    %1096 = vmatpush1.msra.mxu0 %v1045
    %1097 = vmatprep.subr.mxu0 0.0
    %1098 = vmatpush1.msra.mxu0 %v1044
    %1099 = vmatprep.subr.mxu0 0.0
    %1100 = vmatpush1.msra.mxu0 %v1043
    %1101 = vmatprep.subr.mxu0 0.0
    %1102 = vmatpush1.msra.mxu0 %v1042
    %1103 = vmatprep.subr.mxu0 0.0
    %1104 = vmatpush1.msra.mxu0 %v1041
    %1105 = vmatprep.subr.mxu0 0.0
    %1106 = vmatpush1.msra.mxu0 %v1040
    %1107 = vmatprep.subr.mxu0 0.0
    %1108 = vmatpush2.msra.mxu0 0.0
    %1109 = vmatprep.subr.mxu0 0.0
    %1110 = vmatpush2.msra.mxu0 0.0
    %1111 = vmatprep.subr.mxu0 0.0
    %1112 = vmatpush2.msra.mxu0 0.0
    %1113 = vmatprep.subr.mxu0 0.0
    %1114 = vmatpush2.msra.mxu0 0.0
    %1115 = vmatprep.subr.mxu0 0.0
    %1116 = vmatpush2.msra.mxu0 0.0
    %1117 = vmatprep.subr.mxu0 0.0
    %1118 = vmatpush2.msra.mxu0 0.0
    %1119 = vmatprep.subr.mxu0 0.0
    %1120 = vmatpush2.msra.mxu0 0.0
    %1121 = vmatprep.subr.mxu0 0.0
    %1122 = vmatpush2.msra.mxu0 0.0
    %1123 = vmatprep.subr.mxu0 0.0
    %1124 = vmatpush2.msra.mxu0 0.0
    %1125 = vmatprep.subr.mxu0 0.0
    %1126 = vmatpush2.msra.mxu0 0.0
    %1127 = vmatprep.subr.mxu0 0.0
    %1128 = vmatpush2.msra.mxu0 0.0
    %1129 = vmatprep.subr.mxu0 0.0
    %1130 = vmatpush2.msra.mxu0 0.0
    %1131 = vmatprep.subr.mxu0 0.0
    %1132 = vmatpush2.msra.mxu0 %v1059
    %1133 = vmatprep.subr.mxu0 0.0
    %1134 = vmatpush2.msra.mxu0 %v1058
    %1135 = vmatprep.subr.mxu0 0.0
    %1136 = vmatpush2.msra.mxu0 %v1057
    %1137 = vmatprep.subr.mxu0 0.0
    %1138 = vmatpush2.msra.mxu0 %v1056
    %1139 = vmatprep.mubr.f32.mxu0 %v1064
    %1140 = vmatmul.mubr.f32.gmra.mxu0 %v1032
    %v1141 = vpop.f32.mrf.mxu0
    %v1142 = vadd.f32 %v1061, %v1141
    %v1143 = vpop.f32.mrf.mxu0
    %1144 = vmatprep.mubr.f32.mxu0 %v1067
    %1145 = vmatmul.mubr.f32.gmra.mxu0 %v1034
    %v1146 = vpop.f32.mrf.mxu0
    %v1147 = vadd.f32 %v1061, %v1146
    %v1148 = vpop.f32.mrf.mxu0
    %1149 = vmatprep.mubr.f32.mxu0 %v1070
    %1150 = vmatmul.mubr.f32.gmra.mxu0 %v1036
    %v1151 = vpop.f32.mrf.mxu0
    %v1152 = vadd.f32 %v1061, %v1151
    %v1153 = vpop.f32.mrf.mxu0
    %1154 = vmatprep.mubr.f32.mxu0 %v1073
    %1155 = vmatmul.mubr.f32.gmra.mxu0 %v1038
    %v1156 = vpop.f32.mrf.mxu0
    %v1157 = vadd.f32 %v1061, %v1156
    %v1158 = vpop.f32.mrf.mxu0
    %1159 = vdwg.mxu0
    %v1160 = vld [vmem:[%s6] sm:$0xff]
    %v1161 = vld [vmem:[%s6 + $0x8] sm:$0xff]
    %v1162 = vld [vmem:[%s6 + $0x10] sm:$0xff]
    %v1163 = vld [vmem:[%s6 + $0x18] sm:$0xff]
    %v1164 = vld [vmem:[%s6 + $0x20] sm:$0xff]
    %v1165 = vld [vmem:[%s6 + $0x28] sm:$0xff]
    %v1166 = vld [vmem:[%s6 + $0x30] sm:$0xff]
    %v1167 = vld [vmem:[%s6 + $0x38] sm:$0xff]
    %v1168 = vld [vmem:[%s6 + $0x40] sm:$0xff]
    %v1169 = vld [vmem:[%s6 + $0x48] sm:$0xff]
    %v1170 = vld [vmem:[%s6 + $0x50] sm:$0xff]
    %v1171 = vld [vmem:[%s6 + $0x58] sm:$0xff]
    %v1172 = vld [vmem:[%s6 + $0x60] sm:$0xff]
    %v1173 = vld [vmem:[%s6 + $0x68] sm:$0xff]
    %v1174 = vld [vmem:[%s6 + $0x70] sm:$0xff]
    %v1175 = vld [vmem:[%s6 + $0x78] sm:$0xff]
    %v1176 = vld [vmem:[%s6 + $0x80] sm:$0xff]
    %v1177 = vld [vmem:[%s6 + $0x88] sm:$0xff]
    %v1178 = vld [vmem:[%s6 + $0x90] sm:$0xff]
    %v1179 = vld [vmem:[%s6 + $0x98] sm:$0xff]
    %1180 = vmatprep.subr.mxu0 0.0
    %1181 = vmatpush1.msra.mxu0 %v1175
    %1182 = vmatprep.subr.mxu0 0.0
    %1183 = vmatpush1.msra.mxu0 %v1174
    %1184 = vmatprep.subr.mxu0 0.0
    %1185 = vmatpush1.msra.mxu0 %v1173
    %1186 = vmatprep.subr.mxu0 0.0
    %1187 = vmatpush1.msra.mxu0 %v1172
    %1188 = vmatprep.subr.mxu0 0.0
    %1189 = vmatpush1.msra.mxu0 %v1171
    %1190 = vmatprep.subr.mxu0 0.0
    %1191 = vmatpush1.msra.mxu0 %v1170
    %1192 = vmatprep.subr.mxu0 0.0
    %1193 = vmatpush1.msra.mxu0 %v1169
    %1194 = vmatprep.subr.mxu0 0.0
    %1195 = vmatpush1.msra.mxu0 %v1168
    %1196 = vmatprep.subr.mxu0 0.0
    %1197 = vmatpush1.msra.mxu0 %v1167
    %1198 = vmatprep.subr.mxu0 0.0
    %1199 = vmatpush1.msra.mxu0 %v1166
    %1200 = vmatprep.subr.mxu0 0.0
    %1201 = vmatpush1.msra.mxu0 %v1165
    %1202 = vmatprep.subr.mxu0 0.0
    %1203 = vmatpush1.msra.mxu0 %v1164
    %1204 = vmatprep.subr.mxu0 0.0
    %1205 = vmatpush1.msra.mxu0 %v1163
    %1206 = vmatprep.subr.mxu0 0.0
    %1207 = vmatpush1.msra.mxu0 %v1162
    %1208 = vmatprep.subr.mxu0 0.0
    %1209 = vmatpush1.msra.mxu0 %v1161
    %1210 = vmatprep.subr.mxu0 0.0
    %1211 = vmatpush1.msra.mxu0 %v1160
    %1212 = vmatprep.subr.mxu0 0.0
    %1213 = vmatpush2.msra.mxu0 0.0
    %1214 = vmatprep.subr.mxu0 0.0
    %1215 = vmatpush2.msra.mxu0 0.0
    %1216 = vmatprep.subr.mxu0 0.0
    %1217 = vmatpush2.msra.mxu0 0.0
    %1218 = vmatprep.subr.mxu0 0.0
    %1219 = vmatpush2.msra.mxu0 0.0
    %1220 = vmatprep.subr.mxu0 0.0
    %1221 = vmatpush2.msra.mxu0 0.0
    %1222 = vmatprep.subr.mxu0 0.0
    %1223 = vmatpush2.msra.mxu0 0.0
    %1224 = vmatprep.subr.mxu0 0.0
    %1225 = vmatpush2.msra.mxu0 0.0
    %1226 = vmatprep.subr.mxu0 0.0
    %1227 = vmatpush2.msra.mxu0 0.0
    %1228 = vmatprep.subr.mxu0 0.0
    %1229 = vmatpush2.msra.mxu0 0.0
    %1230 = vmatprep.subr.mxu0 0.0
    %1231 = vmatpush2.msra.mxu0 0.0
    %1232 = vmatprep.subr.mxu0 0.0
    %1233 = vmatpush2.msra.mxu0 0.0
    %1234 = vmatprep.subr.mxu0 0.0
    %1235 = vmatpush2.msra.mxu0 0.0
    %1236 = vmatprep.subr.mxu0 0.0
    %1237 = vmatpush2.msra.mxu0 %v1179
    %1238 = vmatprep.subr.mxu0 0.0
    %1239 = vmatpush2.msra.mxu0 %v1178
    %1240 = vmatprep.subr.mxu0 0.0
    %1241 = vmatpush2.msra.mxu0 %v1177
    %1242 = vmatprep.subr.mxu0 0.0
    %1243 = vmatpush2.msra.mxu0 %v1176
    %1244 = vmatprep.mubr.f32.mxu0 %v1064
    %1245 = vmatmul.mubr.f32.gmra.mxu0 %v1032
    %v1246 = vpop.f32.mrf.mxu0
    %v1247 = vadd.f32 %v1061, %v1246
    %v1248 = vpop.f32.mrf.mxu0
    %1249 = vmatprep.mubr.f32.mxu0 %v1067
    %1250 = vmatmul.mubr.f32.gmra.mxu0 %v1034
    %v1251 = vpop.f32.mrf.mxu0
    %v1252 = vadd.f32 %v1061, %v1251
    %v1253 = vpop.f32.mrf.mxu0
    %1254 = vmatprep.mubr.f32.mxu0 %v1070
    %1255 = vmatmul.mubr.f32.gmra.mxu0 %v1036
    %v1256 = vpop.f32.mrf.mxu0
    %v1257 = vadd.f32 %v1061, %v1256
    %v1258 = vpop.f32.mrf.mxu0
    %1259 = vmatprep.mubr.f32.mxu0 %v1073
    %1260 = vmatmul.mubr.f32.gmra.mxu0 %v1038
    %v1261 = vpop.f32.mrf.mxu0
    %v1262 = vadd.f32 %v1061, %v1261
    %v1263 = vpop.f32.mrf.mxu0
    %1264 = vdwg.mxu0
    %v1265 = vmax.f32 %v1142, %v1247
    %v1266 = vmax.f32 %v1147, %v1252
    %v1267 = vmax.f32 %v1152, %v1257
    %v1268 = vmax.f32 %v1157, %v1262
    %v1269 = vmax.f32 %v1265, 0.0
    %v1270 = vmax.f32 %v1266, 0.0
    %v1271 = vmax.f32 %v1267, 0.0
    %v1272 = vmax.f32 %v1268, 0.0
    %v1273 = vld [vmem:[%s7] sm:$0xff]
    %v1274 = vld [vmem:[%s7 + $0x8] sm:$0xff]
    %v1276 = vsel %vm56, %v1273, 0
    %v1279 = vsel %vm56, %v1274, 0
    %1281 = vmatprep.subr.mxu0 0.0
    %1282 = vmatpush1.msra.mxu0 0.0
    %1283 = vmatprep.subr.mxu0 0.0
    %1284 = vmatpush1.msra.mxu0 0.0
    %1285 = vmatprep.subr.mxu0 0.0
    %1286 = vmatpush1.msra.mxu0 0.0
    %1287 = vmatprep.subr.mxu0 0.0
    %1288 = vmatpush1.msra.mxu0 0.0
    %1289 = vmatprep.subr.mxu0 0.0
    %1290 = vmatpush1.msra.mxu0 0.0
    %1291 = vmatprep.subr.mxu0 0.0
    %1292 = vmatpush1.msra.mxu0 0.0
    %1293 = vmatprep.subr.mxu0 0.0
    %1294 = vmatpush1.msra.mxu0 0.0
    %1295 = vmatprep.subr.mxu0 0.0
    %1296 = vmatpush1.msra.mxu0 0.0
    %1297 = vmatprep.subr.mxu0 0.0
    %1298 = vmatpush1.msra.mxu0 0.0
    %1299 = vmatprep.subr.mxu0 0.0
    %1300 = vmatpush1.msra.mxu0 0.0
    %1301 = vmatprep.subr.mxu0 0.0
    %1302 = vmatpush1.msra.mxu0 0.0
    %1303 = vmatprep.subr.mxu0 0.0
    %1304 = vmatpush1.msra.mxu0 0.0
    %1305 = vmatprep.subr.mxu0 0.0
    %1306 = vmatpush1.msra.mxu0 %v1272
    %1307 = vmatprep.subr.mxu0 0.0
    %1308 = vmatpush1.msra.mxu0 %v1271
    %1309 = vmatprep.subr.mxu0 0.0
    %1310 = vmatpush1.msra.mxu0 %v1270
    %1311 = vmatprep.subr.mxu0 0.0
    %1312 = vmatpush1.msra.mxu0 %v1269
    %1313 = vmatprep.subr.mxu0 0.0
    %1314 = vmatpush2.msra.mxu0 0.0
    %1315 = vmatprep.subr.mxu0 0.0
    %1316 = vmatpush2.msra.mxu0 0.0
    %1317 = vmatprep.subr.mxu0 0.0
    %1318 = vmatpush2.msra.mxu0 0.0
    %1319 = vmatprep.subr.mxu0 0.0
    %1320 = vmatpush2.msra.mxu0 0.0
    %1321 = vmatprep.subr.mxu0 0.0
    %1322 = vmatpush2.msra.mxu0 0.0
    %1323 = vmatprep.subr.mxu0 0.0
    %1324 = vmatpush2.msra.mxu0 0.0
    %1325 = vmatprep.subr.mxu0 0.0
    %1326 = vmatpush2.msra.mxu0 0.0
    %1327 = vmatprep.subr.mxu0 0.0
    %1328 = vmatpush2.msra.mxu0 0.0
    %1329 = vmatprep.subr.mxu0 0.0
    %1330 = vmatpush2.msra.mxu0 0.0
    %1331 = vmatprep.subr.mxu0 0.0
    %1332 = vmatpush2.msra.mxu0 0.0
    %1333 = vmatprep.subr.mxu0 0.0
    %1334 = vmatpush2.msra.mxu0 0.0
    %1335 = vmatprep.subr.mxu0 0.0
    %1336 = vmatpush2.msra.mxu0 0.0
    %1337 = vmatprep.subr.mxu0 0.0
    %1338 = vmatpush2.msra.mxu0 0.0
    %1339 = vmatprep.subr.mxu0 0.0
    %1340 = vmatpush2.msra.mxu0 0.0
    %1341 = vmatprep.subr.mxu0 0.0
    %1342 = vmatpush2.msra.mxu0 0.0
    %1343 = vmatprep.subr.mxu0 0.0
    %1344 = vmatpush2.msra.mxu0 0.0
    %1345 = vmatprep.mubr.f32.mxu0 0.0
    %1346 = vmatmul.mubr.f32.gmra.mxu0 %v1276
    %v1347 = vpop.f32.mrf.mxu0
    %v1348 = vadd.f32 0.0, %v1347
    %v1349 = vpop.f32.mrf.mxu0
    %1350 = vmatprep.mubr.f32.mxu0 0.0
    %1351 = vmatmul.mubr.f32.gmra.mxu0 %v1279
    %v1352 = vpop.f32.mrf.mxu0
    %v1353 = vadd.f32 0.0, %v1352
    %v1354 = vpop.f32.mrf.mxu0
    %1355 = vdwg.mxu0
    %v1356 = vld [vmem:[%s8] sm:$0xff]
    %v1357 = vld [vmem:[%s8 + $0x8] sm:$0xff]
    %v1359 = vsel %vm56, %v1356, 0
    %v1362 = vsel %vm56, %v1357, 0
    %1364 = vmatprep.subr.mxu0 0.0
    %1365 = vmatpush1.msra.mxu0 0.0
    %1366 = vmatprep.subr.mxu0 0.0
    %1367 = vmatpush1.msra.mxu0 0.0
    %1368 = vmatprep.subr.mxu0 0.0
    %1369 = vmatpush1.msra.mxu0 0.0
    %1370 = vmatprep.subr.mxu0 0.0
    %1371 = vmatpush1.msra.mxu0 0.0
    %1372 = vmatprep.subr.mxu0 0.0
    %1373 = vmatpush1.msra.mxu0 0.0
    %1374 = vmatprep.subr.mxu0 0.0
    %1375 = vmatpush1.msra.mxu0 0.0
    %1376 = vmatprep.subr.mxu0 0.0
    %1377 = vmatpush1.msra.mxu0 0.0
    %1378 = vmatprep.subr.mxu0 0.0
    %1379 = vmatpush1.msra.mxu0 0.0
    %1380 = vmatprep.subr.mxu0 0.0
    %1381 = vmatpush1.msra.mxu0 0.0
    %1382 = vmatprep.subr.mxu0 0.0
    %1383 = vmatpush1.msra.mxu0 0.0
    %1384 = vmatprep.subr.mxu0 0.0
    %1385 = vmatpush1.msra.mxu0 0.0
    %1386 = vmatprep.subr.mxu0 0.0
    %1387 = vmatpush1.msra.mxu0 0.0
    %1388 = vmatprep.subr.mxu0 0.0
    %1389 = vmatpush1.msra.mxu0 %v1272
    %1390 = vmatprep.subr.mxu0 0.0
    %1391 = vmatpush1.msra.mxu0 %v1271
    %1392 = vmatprep.subr.mxu0 0.0
    %1393 = vmatpush1.msra.mxu0 %v1270
    %1394 = vmatprep.subr.mxu0 0.0
    %1395 = vmatpush1.msra.mxu0 %v1269
    %1396 = vmatprep.subr.mxu0 0.0
    %1397 = vmatpush2.msra.mxu0 0.0
    %1398 = vmatprep.subr.mxu0 0.0
    %1399 = vmatpush2.msra.mxu0 0.0
    %1400 = vmatprep.subr.mxu0 0.0
    %1401 = vmatpush2.msra.mxu0 0.0
    %1402 = vmatprep.subr.mxu0 0.0
    %1403 = vmatpush2.msra.mxu0 0.0
    %1404 = vmatprep.subr.mxu0 0.0
    %1405 = vmatpush2.msra.mxu0 0.0
    %1406 = vmatprep.subr.mxu0 0.0
    %1407 = vmatpush2.msra.mxu0 0.0
    %1408 = vmatprep.subr.mxu0 0.0
    %1409 = vmatpush2.msra.mxu0 0.0
    %1410 = vmatprep.subr.mxu0 0.0
    %1411 = vmatpush2.msra.mxu0 0.0
    %1412 = vmatprep.subr.mxu0 0.0
    %1413 = vmatpush2.msra.mxu0 0.0
    %1414 = vmatprep.subr.mxu0 0.0
    %1415 = vmatpush2.msra.mxu0 0.0
    %1416 = vmatprep.subr.mxu0 0.0
    %1417 = vmatpush2.msra.mxu0 0.0
    %1418 = vmatprep.subr.mxu0 0.0
    %1419 = vmatpush2.msra.mxu0 0.0
    %1420 = vmatprep.subr.mxu0 0.0
    %1421 = vmatpush2.msra.mxu0 0.0
    %1422 = vmatprep.subr.mxu0 0.0
    %1423 = vmatpush2.msra.mxu0 0.0
    %1424 = vmatprep.subr.mxu0 0.0
    %1425 = vmatpush2.msra.mxu0 0.0
    %1426 = vmatprep.subr.mxu0 0.0
    %1427 = vmatpush2.msra.mxu0 0.0
    %1428 = vmatprep.mubr.f32.mxu0 0.0
    %1429 = vmatmul.mubr.f32.gmra.mxu0 %v1359
    %v1430 = vpop.f32.mrf.mxu0
    %v1431 = vadd.f32 0.0, %v1430
    %v1432 = vpop.f32.mrf.mxu0
    %1433 = vmatprep.mubr.f32.mxu0 0.0
    %1434 = vmatmul.mubr.f32.gmra.mxu0 %v1362
    %v1435 = vpop.f32.mrf.mxu0
    %v1436 = vadd.f32 0.0, %v1435
    %v1437 = vpop.f32.mrf.mxu0
    %1438 = vdwg.mxu0
    %v1439 = vmax.f32 %v1348, %v1431
    %v1440 = vmax.f32 %v1353, %v1436
    %vm1441 = vcmask 654336
    %1442 = vst.msk [vmem:[#allocation5] sm:$0xff] %vm1441, 0.0
    %1443 = vst.msk [vmem:[#allocation5 + $0x8] sm:$0xff] %vm1441, 0.0
    %1444 = vst.msk [vmem:[#allocation5 + $0x10] sm:$0xff] %vm1441, 0.0
    %1445 = vst.msk [vmem:[#allocation5 + $0x2] sm:$0xff] %vm1441, %v1439
    %1446 = vst.msk [vmem:[#allocation5 + $0xe] sm:$0xff] %vm1441, %v1440
    %v1447 = vld [vmem:[#allocation5] sm:$0xff]
    %1448 = vst.msk [vmem:[#allocation6] sm:$0xff] %vm1441, %v1447
    %v1449 = vld [vmem:[#allocation5 + $0xc] sm:$0xff]
    %1450 = vst.msk [vmem:[#allocation6 + $0x20] sm:$0xff] %vm1441, %v1449
    %v1451 = vld [vmem:[#allocation5 + $0x1] sm:$0xff]
    %1453 = vrot.lane.b32.xlu0 %v1451, 80
    %v1454 = vpop.permute.xlu0 %1453
    %vm1456 = vcmask 1048192
    %1457 = vst.msk [vmem:[#allocation6] sm:$0xff] %vm1456, %v1454
    %1458 = vst.msk [vmem:[#allocation6 + $0x8] sm:$0xff] %vm56, %v1454
    %v1459 = vld [vmem:[#allocation5 + $0xd] sm:$0xff]
    %1461 = vrot.lane.b32.xlu0 %v1459, 80
    %v1462 = vpop.permute.xlu0 %1461
    %1464 = vst.msk [vmem:[#allocation6 + $0x20] sm:$0xff] %vm1456, %v1462
    %1465 = vst.msk [vmem:[#allocation6 + $0x28] sm:$0xff] %vm56, %v1462
    %v1466 = vld [vmem:[#allocation5 + $0x2] sm:$0xff]
    %1468 = vrot.lane.b32.xlu0 %v1466, 32
    %v1469 = vpop.permute.xlu0 %1468
    %vm1471 = vcmask 916736
    %1472 = vst.msk [vmem:[#allocation6 + $0x8] sm:$0xff] %vm1471, %v1469
    %v1473 = vld [vmem:[#allocation5 + $0xe] sm:$0xff]
    %1475 = vrot.lane.b32.xlu0 %v1473, 32
    %v1476 = vpop.permute.xlu0 %1475
    %1478 = vst.msk [vmem:[#allocation6 + $0x28] sm:$0xff] %vm1471, %v1476
    %v1479 = vld [vmem:[#allocation5 + $0x3] sm:$0xff]
    %1481 = vrot.lane.b32.xlu0 %v1479, 112
    %v1482 = vpop.permute.xlu0 %1481
    %vm1484 = vcmask 1048448
    %1485 = vst.msk [vmem:[#allocation6 + $0x8] sm:$0xff] %vm1484, %v1482
    %vm1486 = vcmask 523264
    %1487 = vst.msk [vmem:[#allocation6 + $0x10] sm:$0xff] %vm1486, %v1482
    %v1488 = vld [vmem:[#allocation5 + $0xf] sm:$0xff]
    %1490 = vrot.lane.b32.xlu0 %v1488, 112
    %v1491 = vpop.permute.xlu0 %1490
    %1493 = vst.msk [vmem:[#allocation6 + $0x28] sm:$0xff] %vm1484, %v1491
    %1494 = vst.msk [vmem:[#allocation6 + $0x30] sm:$0xff] %vm1486, %v1491
    %v1495 = vld [vmem:[#allocation5 + $0x4] sm:$0xff]
    %1497 = vrot.lane.b32.xlu0 %v1495, 64
    %v1498 = vpop.permute.xlu0 %1497
    %vm1500 = vcmask 1048064
    %1501 = vst.msk [vmem:[#allocation6 + $0x10] sm:$0xff] %vm1500, %v1498
    %vm1502 = vcmask 130048
    %1503 = vst.msk [vmem:[#allocation6 + $0x18] sm:$0xff] %vm1502, %v1498
    %v1504 = vld [vmem:[#allocation5 + $0x10] sm:$0xff]
    %1506 = vrot.lane.b32.xlu0 %v1504, 64
    %v1507 = vpop.permute.xlu0 %1506
    %1509 = vst.msk [vmem:[#allocation6 + $0x30] sm:$0xff] %vm1500, %v1507
    %1510 = vst.msk [vmem:[#allocation6 + $0x38] sm:$0xff] %vm1502, %v1507
    %v1511 = vld [vmem:[#allocation6] sm:$0xff]
    %v1512 = vld [vmem:[#allocation6 + $0x8] sm:$0xff]
    %v1513 = vld [vmem:[#allocation6 + $0x10] sm:$0xff]
    %v1514 = vld [vmem:[#allocation6 + $0x18] sm:$0xff]
    %v1515 = vld [vmem:[#allocation6 + $0x20] sm:$0xff]
    %v1516 = vld [vmem:[#allocation6 + $0x28] sm:$0xff]
    %v1517 = vld [vmem:[#allocation6 + $0x30] sm:$0xff]
    %v1518 = vld [vmem:[#allocation6 + $0x38] sm:$0xff]
    %v1519 = vld [vmem:[%s9] sm:$0xff]
    %v1520 = vld [vmem:[%s9 + $0x8] sm:$0xff]
    %v1521 = vld [vmem:[%s9 + $0x10] sm:$0xff]
    %v1522 = vld [vmem:[%s9 + $0x18] sm:$0xff]
    %v1523 = vld [vmem:[%s9 + $0x20] sm:$0xff]
    %v1524 = vld [vmem:[%s9 + $0x28] sm:$0xff]
    %v1525 = vld [vmem:[%s9 + $0x30] sm:$0xff]
    %v1526 = vld [vmem:[%s9 + $0x38] sm:$0xff]
    %v1527 = vld [vmem:[%s9 + $0x40] sm:$0xff]
    %v1528 = vld [vmem:[%s9 + $0x48] sm:$0xff]
    %v1529 = vld [vmem:[%s9 + $0x50] sm:$0xff]
    %v1530 = vld [vmem:[%s9 + $0x58] sm:$0xff]
    %v1531 = vld [vmem:[%s9 + $0x60] sm:$0xff]
    %v1532 = vld [vmem:[%s9 + $0x68] sm:$0xff]
    %v1533 = vld [vmem:[%s9 + $0x70] sm:$0xff]
    %v1534 = vld [vmem:[%s9 + $0x78] sm:$0xff]
    %v1535 = vld [vmem:[%s9 + $0x80] sm:$0xff]
    %v1536 = vld [vmem:[%s9 + $0x88] sm:$0xff]
    %v1537 = vld [vmem:[%s9 + $0x90] sm:$0xff]
    %v1538 = vld [vmem:[%s9 + $0x98] sm:$0xff]
    %v1539 = vld [vmem:[%s9 + $0xa0] sm:$0xff]
    %v1540 = vld [vmem:[%s9 + $0xa8] sm:$0xff]
    %v1541 = vld [vmem:[%s9 + $0xb0] sm:$0xff]
    %v1542 = vld [vmem:[%s9 + $0xb8] sm:$0xff]
    %v1543 = vld [vmem:[%s9 + $0xc0] sm:$0xff]
    %v1544 = vld [vmem:[%s9 + $0xc8] sm:$0xff]
    %v1545 = vld [vmem:[%s9 + $0xd0] sm:$0xff]
    %v1546 = vld [vmem:[%s9 + $0xd8] sm:$0xff]
    %v1547 = vld [vmem:[%s9 + $0xe0] sm:$0xff]
    %v1548 = vld [vmem:[%s9 + $0xe8] sm:$0xff]
    %v1549 = vld [vmem:[%s9 + $0xf0] sm:$0xff]
    %v1550 = vld [vmem:[%s9 + $0xf8] sm:$0xff]
    %v1551 = vld [vmem:[%s9 + $0x100] sm:$0xff]
    %v1552 = vld [vmem:[%s9 + $0x108] sm:$0xff]
    %v1553 = vld [vmem:[%s9 + $0x110] sm:$0xff]
    %v1554 = vld [vmem:[%s9 + $0x118] sm:$0xff]
    %v1555 = vld [vmem:[%s9 + $0x120] sm:$0xff]
    %v1556 = vld [vmem:[%s9 + $0x128] sm:$0xff]
    %v1557 = vld [vmem:[%s9 + $0x130] sm:$0xff]
    %v1558 = vld [vmem:[%s9 + $0x138] sm:$0xff]
    %v1559 = vld [vmem:[%s9 + $0x140] sm:$0xff]
    %v1560 = vld [vmem:[%s9 + $0x148] sm:$0xff]
    %v1561 = vld [vmem:[%s9 + $0x150] sm:$0xff]
    %v1562 = vld [vmem:[%s9 + $0x158] sm:$0xff]
    %v1563 = vld [vmem:[%s9 + $0x160] sm:$0xff]
    %v1564 = vld [vmem:[%s9 + $0x168] sm:$0xff]
    %v1565 = vld [vmem:[%s9 + $0x170] sm:$0xff]
    %v1566 = vld [vmem:[%s9 + $0x178] sm:$0xff]
    %v1567 = vld [vmem:[%s9 + $0x180] sm:$0xff]
    %v1568 = vld [vmem:[%s9 + $0x188] sm:$0xff]
    %v1570 = vlaneseq
    %v1571 = vshrl.u32 %v1570, 7
    %v1572 = vsub.s32 0, %v1571
    %v1573 = vrot.slane %v43, %v1572
    %v1574 = vlaneseq
    %v1575 = vshrl.u32 %v1574, 7
    %v1576 = vsub.s32 1, %v1575
    %v1577 = vrot.slane %v43, %v1576
    %1578 = vrot.lane.b32.xlu0 %v1573, 16
    %v1579 = vpop.permute.xlu0 %1578
    %1580 = vrot.lane.b32.xlu0 %v1577, 16
    %v1581 = vpop.permute.xlu0 %1580
    %v1582 = vsel %vm1502, %v1579, %v1581
    %v1585 = vsel %vm1502, %v1514, 0
    %v1588 = vsel %vm1502, %v1518, 0
    %1590 = vmatprep.subr.mxu0 0.0
    %1591 = vmatpush1.msra.mxu0 %v1534
    %1592 = vmatprep.subr.mxu0 0.0
    %1593 = vmatpush1.msra.mxu0 %v1533
    %1594 = vmatprep.subr.mxu0 0.0
    %1595 = vmatpush1.msra.mxu0 %v1532
    %1596 = vmatprep.subr.mxu0 0.0
    %1597 = vmatpush1.msra.mxu0 %v1531
    %1598 = vmatprep.subr.mxu0 0.0
    %1599 = vmatpush1.msra.mxu0 %v1530
    %1600 = vmatprep.subr.mxu0 0.0
    %1601 = vmatpush1.msra.mxu0 %v1529
    %1602 = vmatprep.subr.mxu0 0.0
    %1603 = vmatpush1.msra.mxu0 %v1528
    %1604 = vmatprep.subr.mxu0 0.0
    %1605 = vmatpush1.msra.mxu0 %v1527
    %1606 = vmatprep.subr.mxu0 0.0
    %1607 = vmatpush1.msra.mxu0 %v1526
    %1608 = vmatprep.subr.mxu0 0.0
    %1609 = vmatpush1.msra.mxu0 %v1525
    %1610 = vmatprep.subr.mxu0 0.0
    %1611 = vmatpush1.msra.mxu0 %v1524
    %1612 = vmatprep.subr.mxu0 0.0
    %1613 = vmatpush1.msra.mxu0 %v1523
    %1614 = vmatprep.subr.mxu0 0.0
    %1615 = vmatpush1.msra.mxu0 %v1522
    %1616 = vmatprep.subr.mxu0 0.0
    %1617 = vmatpush1.msra.mxu0 %v1521
    %1618 = vmatprep.subr.mxu0 0.0
    %1619 = vmatpush1.msra.mxu0 %v1520
    %1620 = vmatprep.subr.mxu0 0.0
    %1621 = vmatpush1.msra.mxu0 %v1519
    %1622 = vmatprep.subr.mxu0 0.0
    %1623 = vmatpush2.msra.mxu0 %v1550
    %1624 = vmatprep.subr.mxu0 0.0
    %1625 = vmatpush2.msra.mxu0 %v1549
    %1626 = vmatprep.subr.mxu0 0.0
    %1627 = vmatpush2.msra.mxu0 %v1548
    %1628 = vmatprep.subr.mxu0 0.0
    %1629 = vmatpush2.msra.mxu0 %v1547
    %1630 = vmatprep.subr.mxu0 0.0
    %1631 = vmatpush2.msra.mxu0 %v1546
    %1632 = vmatprep.subr.mxu0 0.0
    %1633 = vmatpush2.msra.mxu0 %v1545
    %1634 = vmatprep.subr.mxu0 0.0
    %1635 = vmatpush2.msra.mxu0 %v1544
    %1636 = vmatprep.subr.mxu0 0.0
    %1637 = vmatpush2.msra.mxu0 %v1543
    %1638 = vmatprep.subr.mxu0 0.0
    %1639 = vmatpush2.msra.mxu0 %v1542
    %1640 = vmatprep.subr.mxu0 0.0
    %1641 = vmatpush2.msra.mxu0 %v1541
    %1642 = vmatprep.subr.mxu0 0.0
    %1643 = vmatpush2.msra.mxu0 %v1540
    %1644 = vmatprep.subr.mxu0 0.0
    %1645 = vmatpush2.msra.mxu0 %v1539
    %1646 = vmatprep.subr.mxu0 0.0
    %1647 = vmatpush2.msra.mxu0 %v1538
    %1648 = vmatprep.subr.mxu0 0.0
    %1649 = vmatpush2.msra.mxu0 %v1537
    %1650 = vmatprep.subr.mxu0 0.0
    %1651 = vmatpush2.msra.mxu0 %v1536
    %1652 = vmatprep.subr.mxu0 0.0
    %1653 = vmatpush2.msra.mxu0 %v1535
    %1654 = vmatprep.mubr.f32.mxu0 %v1512
    %1655 = vmatmul.mubr.f32.gmra.mxu0 %v1511
    %v1656 = vpop.f32.mrf.mxu0
    %v1657 = vadd.f32 %v1582, %v1656
    %v1658 = vpop.f32.mrf.mxu0
    %1659 = vmatprep.mubr.f32.mxu0 %v1516
    %1660 = vmatmul.mubr.f32.gmra.mxu0 %v1515
    %v1661 = vpop.f32.mrf.mxu0
    %v1662 = vadd.f32 %v1582, %v1661
    %v1663 = vpop.f32.mrf.mxu0
    %1664 = vdwg.mxu0
    %1665 = vmatprep.subr.mxu0 0.0
    %1666 = vmatpush1.msra.mxu0 %v1566
    %1667 = vmatprep.subr.mxu0 0.0
    %1668 = vmatpush1.msra.mxu0 %v1565
    %1669 = vmatprep.subr.mxu0 0.0
    %1670 = vmatpush1.msra.mxu0 %v1564
    %1671 = vmatprep.subr.mxu0 0.0
    %1672 = vmatpush1.msra.mxu0 %v1563
    %1673 = vmatprep.subr.mxu0 0.0
    %1674 = vmatpush1.msra.mxu0 %v1562
    %1675 = vmatprep.subr.mxu0 0.0
    %1676 = vmatpush1.msra.mxu0 %v1561
    %1677 = vmatprep.subr.mxu0 0.0
    %1678 = vmatpush1.msra.mxu0 %v1560
    %1679 = vmatprep.subr.mxu0 0.0
    %1680 = vmatpush1.msra.mxu0 %v1559
    %1681 = vmatprep.subr.mxu0 0.0
    %1682 = vmatpush1.msra.mxu0 %v1558
    %1683 = vmatprep.subr.mxu0 0.0
    %1684 = vmatpush1.msra.mxu0 %v1557
    %1685 = vmatprep.subr.mxu0 0.0
    %1686 = vmatpush1.msra.mxu0 %v1556
    %1687 = vmatprep.subr.mxu0 0.0
    %1688 = vmatpush1.msra.mxu0 %v1555
    %1689 = vmatprep.subr.mxu0 0.0
    %1690 = vmatpush1.msra.mxu0 %v1554
    %1691 = vmatprep.subr.mxu0 0.0
    %1692 = vmatpush1.msra.mxu0 %v1553
    %1693 = vmatprep.subr.mxu0 0.0
    %1694 = vmatpush1.msra.mxu0 %v1552
    %1695 = vmatprep.subr.mxu0 0.0
    %1696 = vmatpush1.msra.mxu0 %v1551
    %1697 = vmatprep.subr.mxu0 0.0
    %1698 = vmatpush2.msra.mxu0 0.0
    %1699 = vmatprep.subr.mxu0 0.0
    %1700 = vmatpush2.msra.mxu0 0.0
    %1701 = vmatprep.subr.mxu0 0.0
    %1702 = vmatpush2.msra.mxu0 0.0
    %1703 = vmatprep.subr.mxu0 0.0
    %1704 = vmatpush2.msra.mxu0 0.0
    %1705 = vmatprep.subr.mxu0 0.0
    %1706 = vmatpush2.msra.mxu0 0.0
    %1707 = vmatprep.subr.mxu0 0.0
    %1708 = vmatpush2.msra.mxu0 0.0
    %1709 = vmatprep.subr.mxu0 0.0
    %1710 = vmatpush2.msra.mxu0 0.0
    %1711 = vmatprep.subr.mxu0 0.0
    %1712 = vmatpush2.msra.mxu0 0.0
    %1713 = vmatprep.subr.mxu0 0.0
    %1714 = vmatpush2.msra.mxu0 0.0
    %1715 = vmatprep.subr.mxu0 0.0
    %1716 = vmatpush2.msra.mxu0 0.0
    %1717 = vmatprep.subr.mxu0 0.0
    %1718 = vmatpush2.msra.mxu0 0.0
    %1719 = vmatprep.subr.mxu0 0.0
    %1720 = vmatpush2.msra.mxu0 0.0
    %1721 = vmatprep.subr.mxu0 0.0
    %1722 = vmatpush2.msra.mxu0 0.0
    %1723 = vmatprep.subr.mxu0 0.0
    %1724 = vmatpush2.msra.mxu0 0.0
    %1725 = vmatprep.subr.mxu0 0.0
    %1726 = vmatpush2.msra.mxu0 %v1568
    %1727 = vmatprep.subr.mxu0 0.0
    %1728 = vmatpush2.msra.mxu0 %v1567
    %1729 = vmatprep.mubr.f32.mxu0 %v1585
    %1730 = vmatmul.mubr.f32.gmra.mxu0 %v1513
    %v1731 = vpop.f32.mrf.mxu0
    %v1732 = vadd.f32 %v1657, %v1731
    %v1733 = vpop.f32.mrf.mxu0
    %1734 = vmatprep.mubr.f32.mxu0 %v1588
    %1735 = vmatmul.mubr.f32.gmra.mxu0 %v1517
    %v1736 = vpop.f32.mrf.mxu0
    %v1737 = vadd.f32 %v1662, %v1736
    %v1738 = vpop.f32.mrf.mxu0
    %1739 = vdwg.mxu0
    %v1740 = vmax.f32 %v1732, 0.0
    %v1741 = vmax.f32 %v1737, 0.0
    %vm1742 = vcmask 326656
    %1743 = vst.msk [vmem:[#allocation7] sm:$0xff] %vm1742, 0.0
    %1744 = vst.msk [vmem:[#allocation7 + $0x8] sm:$0xff] %vm1742, 0.0
    %1745 = vst.msk [vmem:[#allocation7 + $0x10] sm:$0xff] %vm1742, 0.0
    %1746 = vst.msk [vmem:[#allocation7 + $0x2] sm:$0xff] %vm1742, %v1740
    %1747 = vst.msk [vmem:[#allocation7 + $0xe] sm:$0xff] %vm1742, %v1741
    %v1748 = vld [vmem:[#allocation7] sm:$0xff]
    %1749 = vst.msk [vmem:[#allocation8] sm:$0xff] %vm1742, %v1748
    %v1750 = vld [vmem:[#allocation7 + $0xc] sm:$0xff]
    %1751 = vst.msk [vmem:[#allocation8 + $0x10] sm:$0xff] %vm1742, %v1750
    %v1752 = vld [vmem:[#allocation7 + $0x1] sm:$0xff]
    %1754 = vrot.lane.b32.xlu0 %v1752, 40
    %v1755 = vpop.permute.xlu0 %1754
    %vm1757 = vcmask 654656
    %1758 = vst.msk [vmem:[#allocation8] sm:$0xff] %vm1757, %v1755
    %v1759 = vld [vmem:[#allocation7 + $0xd] sm:$0xff]
    %1761 = vrot.lane.b32.xlu0 %v1759, 40
    %v1762 = vpop.permute.xlu0 %1761
    %1764 = vst.msk [vmem:[#allocation8 + $0x10] sm:$0xff] %vm1757, %v1762
    %v1765 = vld [vmem:[#allocation7 + $0x2] sm:$0xff]
    %1767 = vrot.lane.b32.xlu0 %v1765, 80
    %v1768 = vpop.permute.xlu0 %1767
    %vm1770 = vcmask 982656
    %1771 = vst.msk [vmem:[#allocation8] sm:$0xff] %vm1770, %v1768
    %v1772 = vld [vmem:[#allocation7 + $0xe] sm:$0xff]
    %1774 = vrot.lane.b32.xlu0 %v1772, 80
    %v1775 = vpop.permute.xlu0 %1774
    %1777 = vst.msk [vmem:[#allocation8 + $0x10] sm:$0xff] %vm1770, %v1775
    %v1778 = vld [vmem:[#allocation7 + $0x3] sm:$0xff]
    %1780 = vrot.lane.b32.xlu0 %v1778, 120
    %v1781 = vpop.permute.xlu0 %1780
    %vm1783 = vcmask 1048512
    %1784 = vst.msk [vmem:[#allocation8] sm:$0xff] %vm1783, %v1781
    %1785 = vst.msk [vmem:[#allocation8 + $0x8] sm:$0xff] %vm56, %v1781
    %v1786 = vld [vmem:[#allocation7 + $0xf] sm:$0xff]
    %1788 = vrot.lane.b32.xlu0 %v1786, 120
    %v1789 = vpop.permute.xlu0 %1788
    %1791 = vst.msk [vmem:[#allocation8 + $0x10] sm:$0xff] %vm1783, %v1789
    %1792 = vst.msk [vmem:[#allocation8 + $0x18] sm:$0xff] %vm56, %v1789
    %v1793 = vld [vmem:[#allocation7 + $0x4] sm:$0xff]
    %1795 = vrot.lane.b32.xlu0 %v1793, 32
    %v1796 = vpop.permute.xlu0 %1795
    %vm1798 = vcmask 589056
    %1799 = vst.msk [vmem:[#allocation8 + $0x8] sm:$0xff] %vm1798, %v1796
    %v1800 = vld [vmem:[#allocation7 + $0x10] sm:$0xff]
    %1802 = vrot.lane.b32.xlu0 %v1800, 32
    %v1803 = vpop.permute.xlu0 %1802
    %1805 = vst.msk [vmem:[#allocation8 + $0x18] sm:$0xff] %vm1798, %v1803
    %v1806 = vld [vmem:[#allocation8] sm:$0xff]
    %v1807 = vld [vmem:[#allocation8 + $0x8] sm:$0xff]
    %v1808 = vld [vmem:[#allocation8 + $0x10] sm:$0xff]
    %v1809 = vld [vmem:[#allocation8 + $0x18] sm:$0xff]
    %v1810 = vld [vmem:[%s10] sm:$0xff]
    %v1811 = vld [vmem:[%s10 + $0x8] sm:$0xff]
    %v1812 = vld [vmem:[%s10 + $0x10] sm:$0xff]
    %v1813 = vld [vmem:[%s10 + $0x18] sm:$0xff]
    %v1814 = vld [vmem:[%s10 + $0x20] sm:$0xff]
    %v1815 = vld [vmem:[%s10 + $0x28] sm:$0xff]
    %v1816 = vld [vmem:[%s10 + $0x30] sm:$0xff]
    %v1817 = vld [vmem:[%s10 + $0x38] sm:$0xff]
    %v1818 = vld [vmem:[%s10 + $0x40] sm:$0xff]
    %v1819 = vld [vmem:[%s10 + $0x48] sm:$0xff]
    %v1820 = vld [vmem:[%s10 + $0x50] sm:$0xff]
    %v1821 = vld [vmem:[%s10 + $0x58] sm:$0xff]
    %v1822 = vld [vmem:[%s10 + $0x60] sm:$0xff]
    %v1823 = vld [vmem:[%s10 + $0x68] sm:$0xff]
    %v1824 = vld [vmem:[%s10 + $0x70] sm:$0xff]
    %v1825 = vld [vmem:[%s10 + $0x78] sm:$0xff]
    %v1826 = vld [vmem:[%s10 + $0x80] sm:$0xff]
    %v1827 = vld [vmem:[%s10 + $0x88] sm:$0xff]
    %v1828 = vld [vmem:[%s10 + $0x90] sm:$0xff]
    %v1829 = vld [vmem:[%s10 + $0x98] sm:$0xff]
    %v1830 = vld [vmem:[%s10 + $0xa0] sm:$0xff]
    %v1831 = vld [vmem:[%s10 + $0xa8] sm:$0xff]
    %v1832 = vld [vmem:[%s10 + $0xb0] sm:$0xff]
    %v1833 = vld [vmem:[%s10 + $0xb8] sm:$0xff]
    %v1834 = vld [vmem:[%s10 + $0xc0] sm:$0xff]
    %v1836 = vlaneseq
    %v1837 = vshrl.u32 %v1836, 7
    %v1838 = vsub.s32 0, %v1837
    %v1839 = vrot.slane %v44, %v1838
    %1840 = vrot.lane.b32.xlu0 %v1839, 104
    %v1841 = vpop.permute.xlu0 %1840
    %vm1843 = vcmask 588800
    %v1845 = vsel %vm1843, %v1807, 0
    %v1848 = vsel %vm1843, %v1809, 0
    %1850 = vmatprep.subr.mxu0 0.0
    %1851 = vmatpush1.msra.mxu0 %v1825
    %1852 = vmatprep.subr.mxu0 0.0
    %1853 = vmatpush1.msra.mxu0 %v1824
    %1854 = vmatprep.subr.mxu0 0.0
    %1855 = vmatpush1.msra.mxu0 %v1823
    %1856 = vmatprep.subr.mxu0 0.0
    %1857 = vmatpush1.msra.mxu0 %v1822
    %1858 = vmatprep.subr.mxu0 0.0
    %1859 = vmatpush1.msra.mxu0 %v1821
    %1860 = vmatprep.subr.mxu0 0.0
    %1861 = vmatpush1.msra.mxu0 %v1820
    %1862 = vmatprep.subr.mxu0 0.0
    %1863 = vmatpush1.msra.mxu0 %v1819
    %1864 = vmatprep.subr.mxu0 0.0
    %1865 = vmatpush1.msra.mxu0 %v1818
    %1866 = vmatprep.subr.mxu0 0.0
    %1867 = vmatpush1.msra.mxu0 %v1817
    %1868 = vmatprep.subr.mxu0 0.0
    %1869 = vmatpush1.msra.mxu0 %v1816
    %1870 = vmatprep.subr.mxu0 0.0
    %1871 = vmatpush1.msra.mxu0 %v1815
    %1872 = vmatprep.subr.mxu0 0.0
    %1873 = vmatpush1.msra.mxu0 %v1814
    %1874 = vmatprep.subr.mxu0 0.0
    %1875 = vmatpush1.msra.mxu0 %v1813
    %1876 = vmatprep.subr.mxu0 0.0
    %1877 = vmatpush1.msra.mxu0 %v1812
    %1878 = vmatprep.subr.mxu0 0.0
    %1879 = vmatpush1.msra.mxu0 %v1811
    %1880 = vmatprep.subr.mxu0 0.0
    %1881 = vmatpush1.msra.mxu0 %v1810
    %1882 = vmatprep.subr.mxu0 0.0
    %1883 = vmatpush2.msra.mxu0 0.0
    %1884 = vmatprep.subr.mxu0 0.0
    %1885 = vmatpush2.msra.mxu0 0.0
    %1886 = vmatprep.subr.mxu0 0.0
    %1887 = vmatpush2.msra.mxu0 0.0
    %1888 = vmatprep.subr.mxu0 0.0
    %1889 = vmatpush2.msra.mxu0 0.0
    %1890 = vmatprep.subr.mxu0 0.0
    %1891 = vmatpush2.msra.mxu0 0.0
    %1892 = vmatprep.subr.mxu0 0.0
    %1893 = vmatpush2.msra.mxu0 0.0
    %1894 = vmatprep.subr.mxu0 0.0
    %1895 = vmatpush2.msra.mxu0 0.0
    %1896 = vmatprep.subr.mxu0 0.0
    %1897 = vmatpush2.msra.mxu0 %v1834
    %1898 = vmatprep.subr.mxu0 0.0
    %1899 = vmatpush2.msra.mxu0 %v1833
    %1900 = vmatprep.subr.mxu0 0.0
    %1901 = vmatpush2.msra.mxu0 %v1832
    %1902 = vmatprep.subr.mxu0 0.0
    %1903 = vmatpush2.msra.mxu0 %v1831
    %1904 = vmatprep.subr.mxu0 0.0
    %1905 = vmatpush2.msra.mxu0 %v1830
    %1906 = vmatprep.subr.mxu0 0.0
    %1907 = vmatpush2.msra.mxu0 %v1829
    %1908 = vmatprep.subr.mxu0 0.0
    %1909 = vmatpush2.msra.mxu0 %v1828
    %1910 = vmatprep.subr.mxu0 0.0
    %1911 = vmatpush2.msra.mxu0 %v1827
    %1912 = vmatprep.subr.mxu0 0.0
    %1913 = vmatpush2.msra.mxu0 %v1826
    %1914 = vmatprep.mubr.f32.mxu0 %v1845
    %1915 = vmatmul.mubr.f32.gmra.mxu0 %v1806
    %v1916 = vpop.f32.mrf.mxu0
    %v1917 = vadd.f32 %v1841, %v1916
    %v1918 = vpop.f32.mrf.mxu0
    %1919 = vmatprep.mubr.f32.mxu0 %v1848
    %1920 = vmatmul.mubr.f32.gmra.mxu0 %v1808
    %v1921 = vpop.f32.mrf.mxu0
    %v1922 = vadd.f32 %v1841, %v1921
    %v1923 = vpop.f32.mrf.mxu0
    %1924 = vdwg.mxu0
    %vm1925 = vcmask 64512
    %1926 = vst.msk [vmem:[#allocation9] sm:$0xff] %vm1925, %v1917
    %1927 = vst.msk [vmem:[#allocation9 + $0x8] sm:$0xff] %vm1925, %v1922
    // Predicated region
    $region50: #{net_forward.1} parent=1 // pred_check
      _
    $region51: #{net_forward.1} parent=1 // pred_check_branch
      %1929 = sbr.rel (0) target = $region53
    $region52: #{net_forward.1} parent=1 // pred_region
      %s1931 = ssub.s32 256, 256
      %1932 = vsyncadd [#allocation10], %s1931
      %s1933 = sshll.u32 [#allocation9], 4
      %s1934 = int_to_ptr.vmem [resolvable:$true] %s1933
      %1939 = dma.vmem_to_hbm [thread:$0]  %s1934, 256, %s12, [#allocation10], 128, 128, 8
    $region53: #{net_forward.1} parent=1 // pred_fallthru
      _
    // Predicated region
    $region54: #{net_forward.1} parent=1 // pred_check
      _
    $region55: #{net_forward.1} parent=1 // pred_check_branch
      %1941 = sbr.rel (0) target = $region57
    $region56: #{net_forward.1} parent=1 // pred_region
      %1942 = dma.done [#allocation10], 256
    $region57: #{net_forward.1} parent=1 // pred_fallthru
      _
    %1943 = vsyncpa [#allocation10], 1

</llo_original>
